<compile_context>
chip_gen: v7x
topology: tpu7x:2x2x1
jax: 0.10.0
libtpu: 0.0.40
codegen_flags: <defaults>
</compile_context>

<pallas_src>
import jax
import jax.numpy as jnp
from jax import lax
from jax.experimental import pallas as pl
from jax.experimental.pallas import tpu as pltpu


# ----------------------------------------------------------------------------
# Fused kernel: genc (linear+ReLU) -> GRU over T -> MLP classifier head
# ----------------------------------------------------------------------------
def _cpc_fused_kernel(x_ref, gw_ref, gb_ref, wih_ref, bx_ref, whh_ref, bhn_ref,
                      w1_ref, b1_ref, gamma_ref, beta_ref, w2_ref, b2_ref,
                      y_ref, z_ref, c_ref, h_ref):
    B, T, H = c_ref.shape

    # ---- genc: cast x to bf16 in-kernel (no extra HBM pass), MXU matmul with
    # f32 accumulation, bias + ReLU.
    xb = x_ref[...].astype(jnp.bfloat16)
    z2 = jnp.dot(xb, gw_ref[...], preferred_element_type=jnp.float32)
    z2 = jnp.maximum(z2 + gb_ref[...], 0.0)                    # (B*T, Z) f32
    z_ref[...] = z2

    # ---- gar (GRU): hoist ALL input-to-hidden projections out of the
    # recurrence as a single (B*T, Z) @ (Z, 3H) matmul.  bx already contains
    # b_i{r,z,n} with b_h{r,z} folded in (gate order r, z, n as in PyTorch).
    gx = (jnp.dot(z2.astype(jnp.bfloat16), wih_ref[...],
                  preferred_element_type=jnp.float32) + bx_ref[...])
    gx3 = gx.reshape(B, T, 3 * H)
    # TODO(synk): for realistic T, make gx time-major ((T, B, 3H)) so the
    # per-step read is a contiguous leading-axis block.

    whh = whh_ref[...]          # (H, 3H) concatenated recurrent weights, f32
    bhn = bhn_ref[...]          # (1, H)  b_hn (must stay inside r * (...))

    h = jnp.zeros((B, H), jnp.float32)
    for t in range(T):          # static unroll of the (tiny) recurrence
        gh = jnp.dot(h, whh, preferred_element_type=jnp.float32)   # (B, 3H)
        gxt = gx3[:, t, :]                                          # (B, 3H)
        r = jax.nn.sigmoid(gxt[:, :H] + gh[:, :H])
        zg = jax.nn.sigmoid(gxt[:, H:2 * H] + gh[:, H:2 * H])
        n = jnp.tanh(gxt[:, 2 * H:] + r * (gh[:, 2 * H:] + bhn))
        h = (1.0 - zg) * n + zg * h
        # context at every step, written straight into (B, T, H) layout
        c_ref[:, pl.ds(t, 1), :] = h.reshape(B, 1, H)
    h_ref[...] = h              # final hidden state: written once

    # ---- classifier head: Linear -> BatchNorm1d (batch stats) -> ReLU -> Linear
    # mlp_in = concat([c_t, h], -1); c_t == h for a single-layer GRU, so the
    # two W1 halves were folded in the wrapper -> single (B, H) @ (H, Hd) matmul.
    h1 = (jnp.dot(h.astype(jnp.bfloat16), w1_ref[...],
                  preferred_element_type=jnp.float32) + b1_ref[...])
    mean = jnp.mean(h1, axis=0, keepdims=True)
    diff = h1 - mean
    var = jnp.mean(diff * diff, axis=0, keepdims=True)
    scale = gamma_ref[...] * lax.rsqrt(var + 1e-5)   # fold gamma into the scale
    h1r = jnp.maximum(diff * scale + beta_ref[...], 0.0)
    y_ref[...] = (jnp.dot(h1r.astype(jnp.bfloat16), w2_ref[...],
                          preferred_element_type=jnp.float32) + b2_ref[...])
    # TODO(synk): pad the class dim to a lane-dense (>=128) slab for real runs.


def _full_spec(shape):
    nd = len(shape)
    return pl.BlockSpec(shape, lambda i, _nd=nd: (0,) * _nd)


def cpc_fused_call(x2d, genc_w, genc_b, wih, bx, whh, bhn,
                   w1_eff, b1, gamma, beta, w2, b2, *, B, T):
    BT, F = x2d.shape
    Z = genc_w.shape[1]
    H = whh.shape[0]
    Hd = w1_eff.shape[1]
    O = w2.shape[1]
    return pl.pallas_call(
        _cpc_fused_kernel,
        out_shape=(
            jax.ShapeDtypeStruct((B, O), jnp.float32),     # y_pred
            jax.ShapeDtypeStruct((BT, Z), jnp.float32),    # z_t (flat, b-major)
            jax.ShapeDtypeStruct((B, T, H), jnp.float32),  # c (batch-major)
            jax.ShapeDtypeStruct((B, H), jnp.float32),     # h
        ),
        grid=(1,),
        in_specs=[
            _full_spec((BT, F)),        # x2d (f32; cast to bf16 in-kernel)
            _full_spec((F, Z)),         # genc_w (bf16)
            _full_spec((1, Z)),         # genc_b
            _full_spec((Z, 3 * H)),     # gru W_ih concat (r|z|n), bf16
            _full_spec((1, 3 * H)),     # folded gx bias: b_i* + [b_hr,b_hz,0]
            _full_spec((H, 3 * H)),     # gru W_hh concat (r|z|n), f32
            _full_spec((1, H)),         # b_hn
            _full_spec((H, Hd)),        # mlp w1 folded (w1[:H]+w1[H:]), bf16
            _full_spec((1, Hd)),        # mlp b1
            _full_spec((1, Hd)),        # bn gamma
            _full_spec((1, Hd)),        # bn beta
            _full_spec((Hd, O)),        # mlp w2 (bf16)
            _full_spec((1, O)),         # mlp b2
        ],
        out_specs=(
            _full_spec((B, O)),
            _full_spec((BT, Z)),
            _full_spec((B, T, H)),
            _full_spec((B, H)),
        ),
        compiler_params=pltpu.CompilerParams(dimension_semantics=("arbitrary",)),
    )(x2d, genc_w, genc_b, wih, bx, whh, bhn, w1_eff, b1, gamma, beta, w2, b2)


# ----------------------------------------------------------------------------
# Full CPCClassifier forward (single pallas_call, no wrapper data-movement ops)
# ----------------------------------------------------------------------------
def cpc_classifier_forward(x, params):
    B, T, C, Hh, Ww = x.shape
    x2d = x.reshape(B * T, C * Hh * Ww)            # free reshape; f32 into kernel

    H = params["gru_whh"].shape[0]
    # One-time parameter preprocessing (tiny; fused under jit):
    wih = params["gru_wih"].astype(jnp.bfloat16)
    bhh = params["gru_bhh"]
    bx = params["gru_bih"] + jnp.concatenate(
        [bhh[:, :2 * H], jnp.zeros_like(bhh[:, 2 * H:])], axis=-1)
    bhn = bhh[:, 2 * H:]
    w1 = params["mlp_w1"]
    w1_eff = (w1[:H, :] + w1[H:, :]).astype(jnp.bfloat16)   # valid: c_t == h
    w2 = params["mlp_w2"].astype(jnp.bfloat16)

    y_pred, z_flat, c, h_out = cpc_fused_call(
        x2d, params["genc_w"], params["genc_b"],
        wih, bx, params["gru_whh"], bhn,
        w1_eff, params["mlp_b1"], params["bn_gamma"], params["bn_beta"],
        w2, params["mlp_b2"], B=B, T=T)

    z_t = z_flat.reshape(B, T, z_flat.shape[-1])   # contiguous, free reshape
    return {
        "y_pred": y_pred,
        "z_t": z_t,
        "c": c,
        "c_t": h_out,   # c[:, -1, :] == h for a single-layer unidirectional GRU
        "h": h_out,
    }


# ----------------------------------------------------------------------------
# Parameter init (deterministic, PyTorch-style uniform bounds)
# ----------------------------------------------------------------------------
def _uniform(key, shape, bound):
    return jax.random.uniform(key, shape, jnp.float32, -bound, bound)


def init_params(key, feat_dim, z_dim, gar_hidden, mlp_hidden, num_classes):
    keys = jax.random.split(key, 10)
    enc_bound = 1.0 / float(feat_dim) ** 0.5
    g_bound = 1.0 / float(gar_hidden) ** 0.5
    l1_bound = 1.0 / float(2 * gar_hidden) ** 0.5
    l2_bound = 1.0 / float(mlp_hidden) ** 0.5
    params = {
        # genc_w kept permanently in bf16 (MXU input dtype)
        "genc_w": _uniform(keys[0], (feat_dim, z_dim), enc_bound).astype(jnp.bfloat16),
        "genc_b": _uniform(keys[1], (1, z_dim), enc_bound),
        # concatenated GRU weights, gate column order (r | z | n) as in nn.GRU
        "gru_wih": _uniform(keys[2], (z_dim, 3 * gar_hidden), g_bound),
        "gru_whh": _uniform(keys[3], (gar_hidden, 3 * gar_hidden), g_bound),
        "gru_bih": _uniform(keys[4], (1, 3 * gar_hidden), g_bound),
        "gru_bhh": _uniform(keys[5], (1, 3 * gar_hidden), g_bound),
        "mlp_w1": _uniform(keys[6], (2 * gar_hidden, mlp_hidden), l1_bound),
        "mlp_b1": _uniform(keys[7], (1, mlp_hidden), l1_bound),
        "bn_gamma": jnp.ones((1, mlp_hidden), jnp.float32),
        "bn_beta": jnp.zeros((1, mlp_hidden), jnp.float32),
        "mlp_w2": _uniform(keys[8], (mlp_hidden, num_classes), l2_bound),
        "mlp_b2": _uniform(keys[9], (1, num_classes), l2_bound),
    }
    return params


if __name__ == "__main__":
    B, T, C, H, W = 2, 8, 4, 16, 16
    Z_DIM = 32          # genc latent dim
    GAR_HIDDEN = 32     # gar (GRU) hidden dim == c_dim
    MLP_HIDDEN = 32
    NUM_CLASSES = 10

    key = jax.random.PRNGKey(0)
    k_x, k_p = jax.random.split(key)
    x = jax.random.normal(k_x, (B, T, C, H, W), jnp.float32)
    params = init_params(k_p, C * H * W, Z_DIM, GAR_HIDDEN, MLP_HIDDEN, NUM_CLASSES)

    forward = jax.jit(cpc_classifier_forward)
    out = forward(x, params)
    jax.block_until_ready(out["y_pred"])

    assert out["y_pred"].shape == (B, NUM_CLASSES)
    assert out["c"].shape == (B, T, GAR_HIDDEN)
    assert out["c_t"].shape == (B, GAR_HIDDEN)
    assert out["h"].shape == (B, GAR_HIDDEN)
    assert out["z_t"].shape == (B, T, Z_DIM)
    assert bool(jnp.all(jnp.isfinite(out["y_pred"])))
    assert bool(jnp.all(jnp.isfinite(out["c"])))
    print("KERNEL_OK")
</pallas_src>

<mosaic_0001>
module attributes {stable_mosaic.version = 11 : i64} {
  func.func @_cpc_fused_kernel(%arg0: i32, %arg1: memref<16x1024xf32, #tpu.memory_space<vmem>>, %arg2: memref<1024x32xbf16, #tpu.memory_space<vmem>>, %arg3: memref<1x32xf32, #tpu.memory_space<vmem>>, %arg4: memref<32x96xbf16, #tpu.memory_space<vmem>>, %arg5: memref<1x96xf32, #tpu.memory_space<vmem>>, %arg6: memref<32x96xf32, #tpu.memory_space<vmem>>, %arg7: memref<1x32xf32, #tpu.memory_space<vmem>>, %arg8: memref<32x32xbf16, #tpu.memory_space<vmem>>, %arg9: memref<1x32xf32, #tpu.memory_space<vmem>>, %arg10: memref<1x32xf32, #tpu.memory_space<vmem>>, %arg11: memref<1x32xf32, #tpu.memory_space<vmem>>, %arg12: memref<32x10xbf16, #tpu.memory_space<vmem>>, %arg13: memref<1x10xf32, #tpu.memory_space<vmem>>, %arg14: memref<2x10xf32, #tpu.memory_space<vmem>>, %arg15: memref<16x32xf32, #tpu.memory_space<vmem>>, %arg16: memref<2x8x32xf32, #tpu.memory_space<vmem>>, %arg17: memref<2x32xf32, #tpu.memory_space<vmem>>) attributes {dimension_semantics = [#tpu.dimension_semantics<arbitrary>], iteration_bounds = array<i64: 1>, scalar_prefetch = 0 : i64, scratch_operands = 0 : i64, tpu.core_type = #tpu.core_type<tc>, window_params = [{pipeline_mode = #tpu.pipeline_mode<synchronous>, transform_indices = @transform_0, window_bounds = array<i64: 16, 1024>}, {pipeline_mode = #tpu.pipeline_mode<synchronous>, transform_indices = @transform_1, window_bounds = array<i64: 1024, 32>}, {pipeline_mode = #tpu.pipeline_mode<synchronous>, transform_indices = @transform_2, window_bounds = array<i64: 1, 32>}, {pipeline_mode = #tpu.pipeline_mode<synchronous>, transform_indices = @transform_3, window_bounds = array<i64: 32, 96>}, {pipeline_mode = #tpu.pipeline_mode<synchronous>, transform_indices = @transform_4, window_bounds = array<i64: 1, 96>}, {pipeline_mode = #tpu.pipeline_mode<synchronous>, transform_indices = @transform_5, window_bounds = array<i64: 32, 96>}, {pipeline_mode = #tpu.pipeline_mode<synchronous>, transform_indices = @transform_6, window_bounds = array<i64: 1, 32>}, {pipeline_mode = #tpu.pipeline_mode<synchronous>, transform_indices = @transform_7, window_bounds = array<i64: 32, 32>}, {pipeline_mode = #tpu.pipeline_mode<synchronous>, transform_indices = @transform_8, window_bounds = array<i64: 1, 32>}, {pipeline_mode = #tpu.pipeline_mode<synchronous>, transform_indices = @transform_9, window_bounds = array<i64: 1, 32>}, {pipeline_mode = #tpu.pipeline_mode<synchronous>, transform_indices = @transform_10, window_bounds = array<i64: 1, 32>}, {pipeline_mode = #tpu.pipeline_mode<synchronous>, transform_indices = @transform_11, window_bounds = array<i64: 32, 10>}, {pipeline_mode = #tpu.pipeline_mode<synchronous>, transform_indices = @transform_12, window_bounds = array<i64: 1, 10>}, {pipeline_mode = #tpu.pipeline_mode<synchronous>, transform_indices = @transform_13, window_bounds = array<i64: 2, 10>}, {pipeline_mode = #tpu.pipeline_mode<synchronous>, transform_indices = @transform_14, window_bounds = array<i64: 16, 32>}, {pipeline_mode = #tpu.pipeline_mode<synchronous>, transform_indices = @transform_15, window_bounds = array<i64: 2, 8, 32>}, {pipeline_mode = #tpu.pipeline_mode<synchronous>, transform_indices = @transform_16, window_bounds = array<i64: 2, 32>}]} {
    %c0 = arith.constant 0 : index
    %c0_0 = arith.constant 0 : index
    %0 = vector.load %arg1[%c0, %c0_0] : memref<16x1024xf32, #tpu.memory_space<vmem>>, vector<16x1024xf32>
    %1 = arith.truncf %0 : vector<16x1024xf32> to vector<16x1024xbf16>
    %c0_1 = arith.constant 0 : index
    %c0_2 = arith.constant 0 : index
    %2 = vector.load %arg2[%c0_1, %c0_2] : memref<1024x32xbf16, #tpu.memory_space<vmem>>, vector<1024x32xbf16>
    %cst = arith.constant dense<0.000000e+00> : vector<16x32xf32>
    %3 = tpu.matmul %1, %2, %cst {dimension_numbers = #tpu.dot_dimension_numbers<[1], [0], [0], [1], [0, 0, 1, 1], [], []>} : vector<16x1024xbf16>, vector<1024x32xbf16>, vector<16x32xf32> -> vector<16x32xf32>
    %c0_3 = arith.constant 0 : index
    %c0_4 = arith.constant 0 : index
    %4 = vector.load %arg3[%c0_3, %c0_4] : memref<1x32xf32, #tpu.memory_space<vmem>>, vector<1x32xf32>
    %5 = vector.broadcast %4 : vector<1x32xf32> to vector<16x32xf32>
    %6 = arith.addf %3, %5 : vector<16x32xf32>
    %cst_5 = arith.constant 0.000000e+00 : f32
    %7 = vector.broadcast %cst_5 : f32 to vector<16x32xf32>
    %8 = arith.maximumf %6, %7 : vector<16x32xf32>
    %c0_6 = arith.constant 0 : index
    %c0_7 = arith.constant 0 : index
    %9 = vector.load %arg15[%c0_6, %c0_7] : memref<16x32xf32, #tpu.memory_space<vmem>>, vector<16x32xf32>
    tpu.vector_store %arg15[%c0_6, %c0_7], %8 {strides = array<i32>} : memref<16x32xf32, #tpu.memory_space<vmem>>, vector<16x32xf32>,
    %10 = arith.truncf %8 : vector<16x32xf32> to vector<16x32xbf16>
    %c0_8 = arith.constant 0 : index
    %c0_9 = arith.constant 0 : index
    %11 = vector.load %arg4[%c0_8, %c0_9] : memref<32x96xbf16, #tpu.memory_space<vmem>>, vector<32x96xbf16>
    %cst_10 = arith.constant dense<0.000000e+00> : vector<16x96xf32>
    %12 = tpu.matmul %10, %11, %cst_10 {dimension_numbers = #tpu.dot_dimension_numbers<[1], [0], [0], [1], [0, 0, 1, 1], [], []>} : vector<16x32xbf16>, vector<32x96xbf16>, vector<16x96xf32> -> vector<16x96xf32>
    %c0_11 = arith.constant 0 : index
    %c0_12 = arith.constant 0 : index
    %13 = vector.load %arg5[%c0_11, %c0_12] : memref<1x96xf32, #tpu.memory_space<vmem>>, vector<1x96xf32>
    %14 = vector.broadcast %13 : vector<1x96xf32> to vector<16x96xf32>
    %15 = arith.addf %12, %14 : vector<16x96xf32>
    %16 = vector.shape_cast %15 : vector<16x96xf32> to vector<2x8x96xf32>
    %c0_13 = arith.constant 0 : index
    %c0_14 = arith.constant 0 : index
    %17 = vector.load %arg6[%c0_13, %c0_14] : memref<32x96xf32, #tpu.memory_space<vmem>>, vector<32x96xf32>
    %c0_15 = arith.constant 0 : index
    %c0_16 = arith.constant 0 : index
    %18 = vector.load %arg7[%c0_15, %c0_16] : memref<1x32xf32, #tpu.memory_space<vmem>>, vector<1x32xf32>
    %cst_17 = arith.constant 0.000000e+00 : f32
    %19 = vector.broadcast %cst_17 : f32 to vector<2x32xf32>
    %cst_18 = arith.constant dense<0.000000e+00> : vector<2x96xf32>
    %20 = tpu.matmul %19, %17, %cst_18 {dimension_numbers = #tpu.dot_dimension_numbers<[1], [0], [0], [1], [0, 0, 1, 1], [], []>} : vector<2x32xf32>, vector<32x96xf32>, vector<2x96xf32> -> vector<2x96xf32>
    %21 = vector.extract_strided_slice %16 {offsets = [0, 0, 0], sizes = [2, 1, 96], strides = [1, 1, 1]} : vector<2x8x96xf32> to vector<2x1x96xf32>
    %22 = vector.shape_cast %21 : vector<2x1x96xf32> to vector<2x96xf32>
    %23 = vector.extract_strided_slice %22 {offsets = [0, 0], sizes = [2, 32], strides = [1, 1]} : vector<2x96xf32> to vector<2x32xf32>
    %24 = vector.extract_strided_slice %20 {offsets = [0, 0], sizes = [2, 32], strides = [1, 1]} : vector<2x96xf32> to vector<2x32xf32>
    %25 = arith.addf %23, %24 : vector<2x32xf32>
    %26 = arith.negf %25 : vector<2x32xf32>
    %27 = math.exp %26 : vector<2x32xf32>
    %cst_19 = arith.constant 1.000000e+00 : f32
    %28 = vector.broadcast %cst_19 : f32 to vector<2x32xf32>
    %29 = arith.addf %28, %27 : vector<2x32xf32>
    %30 = arith.divf %28, %29 : vector<2x32xf32>
    %31 = vector.extract_strided_slice %22 {offsets = [0, 32], sizes = [2, 32], strides = [1, 1]} : vector<2x96xf32> to vector<2x32xf32>
    %32 = vector.extract_strided_slice %20 {offsets = [0, 32], sizes = [2, 32], strides = [1, 1]} : vector<2x96xf32> to vector<2x32xf32>
    %33 = arith.addf %31, %32 : vector<2x32xf32>
    %34 = arith.negf %33 : vector<2x32xf32>
    %35 = math.exp %34 : vector<2x32xf32>
    %cst_20 = arith.constant 1.000000e+00 : f32
    %36 = vector.broadcast %cst_20 : f32 to vector<2x32xf32>
    %37 = arith.addf %36, %35 : vector<2x32xf32>
    %38 = arith.divf %36, %37 : vector<2x32xf32>
    %39 = vector.extract_strided_slice %22 {offsets = [0, 64], sizes = [2, 32], strides = [1, 1]} : vector<2x96xf32> to vector<2x32xf32>
    %40 = vector.extract_strided_slice %20 {offsets = [0, 64], sizes = [2, 32], strides = [1, 1]} : vector<2x96xf32> to vector<2x32xf32>
    %41 = vector.broadcast %18 : vector<1x32xf32> to vector<2x32xf32>
    %42 = arith.addf %40, %41 : vector<2x32xf32>
    %43 = arith.mulf %30, %42 : vector<2x32xf32>
    %44 = arith.addf %39, %43 : vector<2x32xf32>
    %45 = math.tanh %44 : vector<2x32xf32>
    %cst_21 = arith.constant 1.000000e+00 : f32
    %46 = vector.broadcast %cst_21 : f32 to vector<2x32xf32>
    %47 = arith.subf %46, %38 : vector<2x32xf32>
    %48 = arith.mulf %47, %45 : vector<2x32xf32>
    %49 = arith.mulf %38, %19 : vector<2x32xf32>
    %50 = arith.addf %48, %49 : vector<2x32xf32>
    %51 = vector.shape_cast %50 : vector<2x32xf32> to vector<2x1x32xf32>
    %c0_22 = arith.constant 0 : index
    %c0_23 = arith.constant 0 : index
    %c0_24 = arith.constant 0 : index
    %52 = vector.load %arg16[%c0_22, %c0_23, %c0_24] : memref<2x8x32xf32, #tpu.memory_space<vmem>>, vector<2x1x32xf32>
    tpu.vector_store %arg16[%c0_22, %c0_23, %c0_24], %51 {strides = array<i32>} : memref<2x8x32xf32, #tpu.memory_space<vmem>>, vector<2x1x32xf32>,
    %cst_25 = arith.constant dense<0.000000e+00> : vector<2x96xf32>
    %53 = tpu.matmul %50, %17, %cst_25 {dimension_numbers = #tpu.dot_dimension_numbers<[1], [0], [0], [1], [0, 0, 1, 1], [], []>} : vector<2x32xf32>, vector<32x96xf32>, vector<2x96xf32> -> vector<2x96xf32>
    %54 = vector.extract_strided_slice %16 {offsets = [0, 1, 0], sizes = [2, 1, 96], strides = [1, 1, 1]} : vector<2x8x96xf32> to vector<2x1x96xf32>
    %55 = vector.shape_cast %54 : vector<2x1x96xf32> to vector<2x96xf32>
    %56 = vector.extract_strided_slice %55 {offsets = [0, 0], sizes = [2, 32], strides = [1, 1]} : vector<2x96xf32> to vector<2x32xf32>
    %57 = vector.extract_strided_slice %53 {offsets = [0, 0], sizes = [2, 32], strides = [1, 1]} : vector<2x96xf32> to vector<2x32xf32>
    %58 = arith.addf %56, %57 : vector<2x32xf32>
    %59 = arith.negf %58 : vector<2x32xf32>
    %60 = math.exp %59 : vector<2x32xf32>
    %cst_26 = arith.constant 1.000000e+00 : f32
    %61 = vector.broadcast %cst_26 : f32 to vector<2x32xf32>
    %62 = arith.addf %61, %60 : vector<2x32xf32>
    %63 = arith.divf %61, %62 : vector<2x32xf32>
    %64 = vector.extract_strided_slice %55 {offsets = [0, 32], sizes = [2, 32], strides = [1, 1]} : vector<2x96xf32> to vector<2x32xf32>
    %65 = vector.extract_strided_slice %53 {offsets = [0, 32], sizes = [2, 32], strides = [1, 1]} : vector<2x96xf32> to vector<2x32xf32>
    %66 = arith.addf %64, %65 : vector<2x32xf32>
    %67 = arith.negf %66 : vector<2x32xf32>
    %68 = math.exp %67 : vector<2x32xf32>
    %cst_27 = arith.constant 1.000000e+00 : f32
    %69 = vector.broadcast %cst_27 : f32 to vector<2x32xf32>
    %70 = arith.addf %69, %68 : vector<2x32xf32>
    %71 = arith.divf %69, %70 : vector<2x32xf32>
    %72 = vector.extract_strided_slice %55 {offsets = [0, 64], sizes = [2, 32], strides = [1, 1]} : vector<2x96xf32> to vector<2x32xf32>
    %73 = vector.extract_strided_slice %53 {offsets = [0, 64], sizes = [2, 32], strides = [1, 1]} : vector<2x96xf32> to vector<2x32xf32>
    %74 = vector.broadcast %18 : vector<1x32xf32> to vector<2x32xf32>
    %75 = arith.addf %73, %74 : vector<2x32xf32>
    %76 = arith.mulf %63, %75 : vector<2x32xf32>
    %77 = arith.addf %72, %76 : vector<2x32xf32>
    %78 = math.tanh %77 : vector<2x32xf32>
    %cst_28 = arith.constant 1.000000e+00 : f32
    %79 = vector.broadcast %cst_28 : f32 to vector<2x32xf32>
    %80 = arith.subf %79, %71 : vector<2x32xf32>
    %81 = arith.mulf %80, %78 : vector<2x32xf32>
    %82 = arith.mulf %71, %50 : vector<2x32xf32>
    %83 = arith.addf %81, %82 : vector<2x32xf32>
    %84 = vector.shape_cast %83 : vector<2x32xf32> to vector<2x1x32xf32>
    %c0_29 = arith.constant 0 : index
    %c1 = arith.constant 1 : index
    %c0_30 = arith.constant 0 : index
    %85 = vector.load %arg16[%c0_29, %c1, %c0_30] : memref<2x8x32xf32, #tpu.memory_space<vmem>>, vector<2x1x32xf32>
    tpu.vector_store %arg16[%c0_29, %c1, %c0_30], %84 {strides = array<i32>} : memref<2x8x32xf32, #tpu.memory_space<vmem>>, vector<2x1x32xf32>,
    %cst_31 = arith.constant dense<0.000000e+00> : vector<2x96xf32>
    %86 = tpu.matmul %83, %17, %cst_31 {dimension_numbers = #tpu.dot_dimension_numbers<[1], [0], [0], [1], [0, 0, 1, 1], [], []>} : vector<2x32xf32>, vector<32x96xf32>, vector<2x96xf32> -> vector<2x96xf32>
    %87 = vector.extract_strided_slice %16 {offsets = [0, 2, 0], sizes = [2, 1, 96], strides = [1, 1, 1]} : vector<2x8x96xf32> to vector<2x1x96xf32>
    %88 = vector.shape_cast %87 : vector<2x1x96xf32> to vector<2x96xf32>
    %89 = vector.extract_strided_slice %88 {offsets = [0, 0], sizes = [2, 32], strides = [1, 1]} : vector<2x96xf32> to vector<2x32xf32>
    %90 = vector.extract_strided_slice %86 {offsets = [0, 0], sizes = [2, 32], strides = [1, 1]} : vector<2x96xf32> to vector<2x32xf32>
    %91 = arith.addf %89, %90 : vector<2x32xf32>
    %92 = arith.negf %91 : vector<2x32xf32>
    %93 = math.exp %92 : vector<2x32xf32>
    %cst_32 = arith.constant 1.000000e+00 : f32
    %94 = vector.broadcast %cst_32 : f32 to vector<2x32xf32>
    %95 = arith.addf %94, %93 : vector<2x32xf32>
    %96 = arith.divf %94, %95 : vector<2x32xf32>
    %97 = vector.extract_strided_slice %88 {offsets = [0, 32], sizes = [2, 32], strides = [1, 1]} : vector<2x96xf32> to vector<2x32xf32>
    %98 = vector.extract_strided_slice %86 {offsets = [0, 32], sizes = [2, 32], strides = [1, 1]} : vector<2x96xf32> to vector<2x32xf32>
    %99 = arith.addf %97, %98 : vector<2x32xf32>
    %100 = arith.negf %99 : vector<2x32xf32>
    %101 = math.exp %100 : vector<2x32xf32>
    %cst_33 = arith.constant 1.000000e+00 : f32
    %102 = vector.broadcast %cst_33 : f32 to vector<2x32xf32>
    %103 = arith.addf %102, %101 : vector<2x32xf32>
    %104 = arith.divf %102, %103 : vector<2x32xf32>
    %105 = vector.extract_strided_slice %88 {offsets = [0, 64], sizes = [2, 32], strides = [1, 1]} : vector<2x96xf32> to vector<2x32xf32>
    %106 = vector.extract_strided_slice %86 {offsets = [0, 64], sizes = [2, 32], strides = [1, 1]} : vector<2x96xf32> to vector<2x32xf32>
    %107 = vector.broadcast %18 : vector<1x32xf32> to vector<2x32xf32>
    %108 = arith.addf %106, %107 : vector<2x32xf32>
    %109 = arith.mulf %96, %108 : vector<2x32xf32>
    %110 = arith.addf %105, %109 : vector<2x32xf32>
    %111 = math.tanh %110 : vector<2x32xf32>
    %cst_34 = arith.constant 1.000000e+00 : f32
    %112 = vector.broadcast %cst_34 : f32 to vector<2x32xf32>
    %113 = arith.subf %112, %104 : vector<2x32xf32>
    %114 = arith.mulf %113, %111 : vector<2x32xf32>
    %115 = arith.mulf %104, %83 : vector<2x32xf32>
    %116 = arith.addf %114, %115 : vector<2x32xf32>
    %117 = vector.shape_cast %116 : vector<2x32xf32> to vector<2x1x32xf32>
    %c0_35 = arith.constant 0 : index
    %c2 = arith.constant 2 : index
    %c0_36 = arith.constant 0 : index
    %118 = vector.load %arg16[%c0_35, %c2, %c0_36] : memref<2x8x32xf32, #tpu.memory_space<vmem>>, vector<2x1x32xf32>
    tpu.vector_store %arg16[%c0_35, %c2, %c0_36], %117 {strides = array<i32>} : memref<2x8x32xf32, #tpu.memory_space<vmem>>, vector<2x1x32xf32>,
    %cst_37 = arith.constant dense<0.000000e+00> : vector<2x96xf32>
    %119 = tpu.matmul %116, %17, %cst_37 {dimension_numbers = #tpu.dot_dimension_numbers<[1], [0], [0], [1], [0, 0, 1, 1], [], []>} : vector<2x32xf32>, vector<32x96xf32>, vector<2x96xf32> -> vector<2x96xf32>
    %120 = vector.extract_strided_slice %16 {offsets = [0, 3, 0], sizes = [2, 1, 96], strides = [1, 1, 1]} : vector<2x8x96xf32> to vector<2x1x96xf32>
    %121 = vector.shape_cast %120 : vector<2x1x96xf32> to vector<2x96xf32>
    %122 = vector.extract_strided_slice %121 {offsets = [0, 0], sizes = [2, 32], strides = [1, 1]} : vector<2x96xf32> to vector<2x32xf32>
    %123 = vector.extract_strided_slice %119 {offsets = [0, 0], sizes = [2, 32], strides = [1, 1]} : vector<2x96xf32> to vector<2x32xf32>
    %124 = arith.addf %122, %123 : vector<2x32xf32>
    %125 = arith.negf %124 : vector<2x32xf32>
    %126 = math.exp %125 : vector<2x32xf32>
    %cst_38 = arith.constant 1.000000e+00 : f32
    %127 = vector.broadcast %cst_38 : f32 to vector<2x32xf32>
    %128 = arith.addf %127, %126 : vector<2x32xf32>
    %129 = arith.divf %127, %128 : vector<2x32xf32>
    %130 = vector.extract_strided_slice %121 {offsets = [0, 32], sizes = [2, 32], strides = [1, 1]} : vector<2x96xf32> to vector<2x32xf32>
    %131 = vector.extract_strided_slice %119 {offsets = [0, 32], sizes = [2, 32], strides = [1, 1]} : vector<2x96xf32> to vector<2x32xf32>
    %132 = arith.addf %130, %131 : vector<2x32xf32>
    %133 = arith.negf %132 : vector<2x32xf32>
    %134 = math.exp %133 : vector<2x32xf32>
    %cst_39 = arith.constant 1.000000e+00 : f32
    %135 = vector.broadcast %cst_39 : f32 to vector<2x32xf32>
    %136 = arith.addf %135, %134 : vector<2x32xf32>
    %137 = arith.divf %135, %136 : vector<2x32xf32>
    %138 = vector.extract_strided_slice %121 {offsets = [0, 64], sizes = [2, 32], strides = [1, 1]} : vector<2x96xf32> to vector<2x32xf32>
    %139 = vector.extract_strided_slice %119 {offsets = [0, 64], sizes = [2, 32], strides = [1, 1]} : vector<2x96xf32> to vector<2x32xf32>
    %140 = vector.broadcast %18 : vector<1x32xf32> to vector<2x32xf32>
    %141 = arith.addf %139, %140 : vector<2x32xf32>
    %142 = arith.mulf %129, %141 : vector<2x32xf32>
    %143 = arith.addf %138, %142 : vector<2x32xf32>
    %144 = math.tanh %143 : vector<2x32xf32>
    %cst_40 = arith.constant 1.000000e+00 : f32
    %145 = vector.broadcast %cst_40 : f32 to vector<2x32xf32>
    %146 = arith.subf %145, %137 : vector<2x32xf32>
    %147 = arith.mulf %146, %144 : vector<2x32xf32>
    %148 = arith.mulf %137, %116 : vector<2x32xf32>
    %149 = arith.addf %147, %148 : vector<2x32xf32>
    %150 = vector.shape_cast %149 : vector<2x32xf32> to vector<2x1x32xf32>
    %c0_41 = arith.constant 0 : index
    %c3 = arith.constant 3 : index
    %c0_42 = arith.constant 0 : index
    %151 = vector.load %arg16[%c0_41, %c3, %c0_42] : memref<2x8x32xf32, #tpu.memory_space<vmem>>, vector<2x1x32xf32>
    tpu.vector_store %arg16[%c0_41, %c3, %c0_42], %150 {strides = array<i32>} : memref<2x8x32xf32, #tpu.memory_space<vmem>>, vector<2x1x32xf32>,
    %cst_43 = arith.constant dense<0.000000e+00> : vector<2x96xf32>
    %152 = tpu.matmul %149, %17, %cst_43 {dimension_numbers = #tpu.dot_dimension_numbers<[1], [0], [0], [1], [0, 0, 1, 1], [], []>} : vector<2x32xf32>, vector<32x96xf32>, vector<2x96xf32> -> vector<2x96xf32>
    %153 = vector.extract_strided_slice %16 {offsets = [0, 4, 0], sizes = [2, 1, 96], strides = [1, 1, 1]} : vector<2x8x96xf32> to vector<2x1x96xf32>
    %154 = vector.shape_cast %153 : vector<2x1x96xf32> to vector<2x96xf32>
    %155 = vector.extract_strided_slice %154 {offsets = [0, 0], sizes = [2, 32], strides = [1, 1]} : vector<2x96xf32> to vector<2x32xf32>
    %156 = vector.extract_strided_slice %152 {offsets = [0, 0], sizes = [2, 32], strides = [1, 1]} : vector<2x96xf32> to vector<2x32xf32>
    %157 = arith.addf %155, %156 : vector<2x32xf32>
    %158 = arith.negf %157 : vector<2x32xf32>
    %159 = math.exp %158 : vector<2x32xf32>
    %cst_44 = arith.constant 1.000000e+00 : f32
    %160 = vector.broadcast %cst_44 : f32 to vector<2x32xf32>
    %161 = arith.addf %160, %159 : vector<2x32xf32>
    %162 = arith.divf %160, %161 : vector<2x32xf32>
    %163 = vector.extract_strided_slice %154 {offsets = [0, 32], sizes = [2, 32], strides = [1, 1]} : vector<2x96xf32> to vector<2x32xf32>
    %164 = vector.extract_strided_slice %152 {offsets = [0, 32], sizes = [2, 32], strides = [1, 1]} : vector<2x96xf32> to vector<2x32xf32>
    %165 = arith.addf %163, %164 : vector<2x32xf32>
    %166 = arith.negf %165 : vector<2x32xf32>
    %167 = math.exp %166 : vector<2x32xf32>
    %cst_45 = arith.constant 1.000000e+00 : f32
    %168 = vector.broadcast %cst_45 : f32 to vector<2x32xf32>
    %169 = arith.addf %168, %167 : vector<2x32xf32>
    %170 = arith.divf %168, %169 : vector<2x32xf32>
    %171 = vector.extract_strided_slice %154 {offsets = [0, 64], sizes = [2, 32], strides = [1, 1]} : vector<2x96xf32> to vector<2x32xf32>
    %172 = vector.extract_strided_slice %152 {offsets = [0, 64], sizes = [2, 32], strides = [1, 1]} : vector<2x96xf32> to vector<2x32xf32>
    %173 = vector.broadcast %18 : vector<1x32xf32> to vector<2x32xf32>
    %174 = arith.addf %172, %173 : vector<2x32xf32>
    %175 = arith.mulf %162, %174 : vector<2x32xf32>
    %176 = arith.addf %171, %175 : vector<2x32xf32>
    %177 = math.tanh %176 : vector<2x32xf32>
    %cst_46 = arith.constant 1.000000e+00 : f32
    %178 = vector.broadcast %cst_46 : f32 to vector<2x32xf32>
    %179 = arith.subf %178, %170 : vector<2x32xf32>
    %180 = arith.mulf %179, %177 : vector<2x32xf32>
    %181 = arith.mulf %170, %149 : vector<2x32xf32>
    %182 = arith.addf %180, %181 : vector<2x32xf32>
    %183 = vector.shape_cast %182 : vector<2x32xf32> to vector<2x1x32xf32>
    %c0_47 = arith.constant 0 : index
    %c4 = arith.constant 4 : index
    %c0_48 = arith.constant 0 : index
    %184 = vector.load %arg16[%c0_47, %c4, %c0_48] : memref<2x8x32xf32, #tpu.memory_space<vmem>>, vector<2x1x32xf32>
    tpu.vector_store %arg16[%c0_47, %c4, %c0_48], %183 {strides = array<i32>} : memref<2x8x32xf32, #tpu.memory_space<vmem>>, vector<2x1x32xf32>,
    %cst_49 = arith.constant dense<0.000000e+00> : vector<2x96xf32>
    %185 = tpu.matmul %182, %17, %cst_49 {dimension_numbers = #tpu.dot_dimension_numbers<[1], [0], [0], [1], [0, 0, 1, 1], [], []>} : vector<2x32xf32>, vector<32x96xf32>, vector<2x96xf32> -> vector<2x96xf32>
    %186 = vector.extract_strided_slice %16 {offsets = [0, 5, 0], sizes = [2, 1, 96], strides = [1, 1, 1]} : vector<2x8x96xf32> to vector<2x1x96xf32>
    %187 = vector.shape_cast %186 : vector<2x1x96xf32> to vector<2x96xf32>
    %188 = vector.extract_strided_slice %187 {offsets = [0, 0], sizes = [2, 32], strides = [1, 1]} : vector<2x96xf32> to vector<2x32xf32>
    %189 = vector.extract_strided_slice %185 {offsets = [0, 0], sizes = [2, 32], strides = [1, 1]} : vector<2x96xf32> to vector<2x32xf32>
    %190 = arith.addf %188, %189 : vector<2x32xf32>
    %191 = arith.negf %190 : vector<2x32xf32>
    %192 = math.exp %191 : vector<2x32xf32>
    %cst_50 = arith.constant 1.000000e+00 : f32
    %193 = vector.broadcast %cst_50 : f32 to vector<2x32xf32>
    %194 = arith.addf %193, %192 : vector<2x32xf32>
    %195 = arith.divf %193, %194 : vector<2x32xf32>
    %196 = vector.extract_strided_slice %187 {offsets = [0, 32], sizes = [2, 32], strides = [1, 1]} : vector<2x96xf32> to vector<2x32xf32>
    %197 = vector.extract_strided_slice %185 {offsets = [0, 32], sizes = [2, 32], strides = [1, 1]} : vector<2x96xf32> to vector<2x32xf32>
    %198 = arith.addf %196, %197 : vector<2x32xf32>
    %199 = arith.negf %198 : vector<2x32xf32>
    %200 = math.exp %199 : vector<2x32xf32>
    %cst_51 = arith.constant 1.000000e+00 : f32
    %201 = vector.broadcast %cst_51 : f32 to vector<2x32xf32>
    %202 = arith.addf %201, %200 : vector<2x32xf32>
    %203 = arith.divf %201, %202 : vector<2x32xf32>
    %204 = vector.extract_strided_slice %187 {offsets = [0, 64], sizes = [2, 32], strides = [1, 1]} : vector<2x96xf32> to vector<2x32xf32>
    %205 = vector.extract_strided_slice %185 {offsets = [0, 64], sizes = [2, 32], strides = [1, 1]} : vector<2x96xf32> to vector<2x32xf32>
    %206 = vector.broadcast %18 : vector<1x32xf32> to vector<2x32xf32>
    %207 = arith.addf %205, %206 : vector<2x32xf32>
    %208 = arith.mulf %195, %207 : vector<2x32xf32>
    %209 = arith.addf %204, %208 : vector<2x32xf32>
    %210 = math.tanh %209 : vector<2x32xf32>
    %cst_52 = arith.constant 1.000000e+00 : f32
    %211 = vector.broadcast %cst_52 : f32 to vector<2x32xf32>
    %212 = arith.subf %211, %203 : vector<2x32xf32>
    %213 = arith.mulf %212, %210 : vector<2x32xf32>
    %214 = arith.mulf %203, %182 : vector<2x32xf32>
    %215 = arith.addf %213, %214 : vector<2x32xf32>
    %216 = vector.shape_cast %215 : vector<2x32xf32> to vector<2x1x32xf32>
    %c0_53 = arith.constant 0 : index
    %c5 = arith.constant 5 : index
    %c0_54 = arith.constant 0 : index
    %217 = vector.load %arg16[%c0_53, %c5, %c0_54] : memref<2x8x32xf32, #tpu.memory_space<vmem>>, vector<2x1x32xf32>
    tpu.vector_store %arg16[%c0_53, %c5, %c0_54], %216 {strides = array<i32>} : memref<2x8x32xf32, #tpu.memory_space<vmem>>, vector<2x1x32xf32>,
    %cst_55 = arith.constant dense<0.000000e+00> : vector<2x96xf32>
    %218 = tpu.matmul %215, %17, %cst_55 {dimension_numbers = #tpu.dot_dimension_numbers<[1], [0], [0], [1], [0, 0, 1, 1], [], []>} : vector<2x32xf32>, vector<32x96xf32>, vector<2x96xf32> -> vector<2x96xf32>
    %219 = vector.extract_strided_slice %16 {offsets = [0, 6, 0], sizes = [2, 1, 96], strides = [1, 1, 1]} : vector<2x8x96xf32> to vector<2x1x96xf32>
    %220 = vector.shape_cast %219 : vector<2x1x96xf32> to vector<2x96xf32>
    %221 = vector.extract_strided_slice %220 {offsets = [0, 0], sizes = [2, 32], strides = [1, 1]} : vector<2x96xf32> to vector<2x32xf32>
    %222 = vector.extract_strided_slice %218 {offsets = [0, 0], sizes = [2, 32], strides = [1, 1]} : vector<2x96xf32> to vector<2x32xf32>
    %223 = arith.addf %221, %222 : vector<2x32xf32>
    %224 = arith.negf %223 : vector<2x32xf32>
    %225 = math.exp %224 : vector<2x32xf32>
    %cst_56 = arith.constant 1.000000e+00 : f32
    %226 = vector.broadcast %cst_56 : f32 to vector<2x32xf32>
    %227 = arith.addf %226, %225 : vector<2x32xf32>
    %228 = arith.divf %226, %227 : vector<2x32xf32>
    %229 = vector.extract_strided_slice %220 {offsets = [0, 32], sizes = [2, 32], strides = [1, 1]} : vector<2x96xf32> to vector<2x32xf32>
    %230 = vector.extract_strided_slice %218 {offsets = [0, 32], sizes = [2, 32], strides = [1, 1]} : vector<2x96xf32> to vector<2x32xf32>
    %231 = arith.addf %229, %230 : vector<2x32xf32>
    %232 = arith.negf %231 : vector<2x32xf32>
    %233 = math.exp %232 : vector<2x32xf32>
    %cst_57 = arith.constant 1.000000e+00 : f32
    %234 = vector.broadcast %cst_57 : f32 to vector<2x32xf32>
    %235 = arith.addf %234, %233 : vector<2x32xf32>
    %236 = arith.divf %234, %235 : vector<2x32xf32>
    %237 = vector.extract_strided_slice %220 {offsets = [0, 64], sizes = [2, 32], strides = [1, 1]} : vector<2x96xf32> to vector<2x32xf32>
    %238 = vector.extract_strided_slice %218 {offsets = [0, 64], sizes = [2, 32], strides = [1, 1]} : vector<2x96xf32> to vector<2x32xf32>
    %239 = vector.broadcast %18 : vector<1x32xf32> to vector<2x32xf32>
    %240 = arith.addf %238, %239 : vector<2x32xf32>
    %241 = arith.mulf %228, %240 : vector<2x32xf32>
    %242 = arith.addf %237, %241 : vector<2x32xf32>
    %243 = math.tanh %242 : vector<2x32xf32>
    %cst_58 = arith.constant 1.000000e+00 : f32
    %244 = vector.broadcast %cst_58 : f32 to vector<2x32xf32>
    %245 = arith.subf %244, %236 : vector<2x32xf32>
    %246 = arith.mulf %245, %243 : vector<2x32xf32>
    %247 = arith.mulf %236, %215 : vector<2x32xf32>
    %248 = arith.addf %246, %247 : vector<2x32xf32>
    %249 = vector.shape_cast %248 : vector<2x32xf32> to vector<2x1x32xf32>
    %c0_59 = arith.constant 0 : index
    %c6 = arith.constant 6 : index
    %c0_60 = arith.constant 0 : index
    %250 = vector.load %arg16[%c0_59, %c6, %c0_60] : memref<2x8x32xf32, #tpu.memory_space<vmem>>, vector<2x1x32xf32>
    tpu.vector_store %arg16[%c0_59, %c6, %c0_60], %249 {strides = array<i32>} : memref<2x8x32xf32, #tpu.memory_space<vmem>>, vector<2x1x32xf32>,
    %cst_61 = arith.constant dense<0.000000e+00> : vector<2x96xf32>
    %251 = tpu.matmul %248, %17, %cst_61 {dimension_numbers = #tpu.dot_dimension_numbers<[1], [0], [0], [1], [0, 0, 1, 1], [], []>} : vector<2x32xf32>, vector<32x96xf32>, vector<2x96xf32> -> vector<2x96xf32>
    %252 = vector.extract_strided_slice %16 {offsets = [0, 7, 0], sizes = [2, 1, 96], strides = [1, 1, 1]} : vector<2x8x96xf32> to vector<2x1x96xf32>
    %253 = vector.shape_cast %252 : vector<2x1x96xf32> to vector<2x96xf32>
    %254 = vector.extract_strided_slice %253 {offsets = [0, 0], sizes = [2, 32], strides = [1, 1]} : vector<2x96xf32> to vector<2x32xf32>
    %255 = vector.extract_strided_slice %251 {offsets = [0, 0], sizes = [2, 32], strides = [1, 1]} : vector<2x96xf32> to vector<2x32xf32>
    %256 = arith.addf %254, %255 : vector<2x32xf32>
    %257 = arith.negf %256 : vector<2x32xf32>
    %258 = math.exp %257 : vector<2x32xf32>
    %cst_62 = arith.constant 1.000000e+00 : f32
    %259 = vector.broadcast %cst_62 : f32 to vector<2x32xf32>
    %260 = arith.addf %259, %258 : vector<2x32xf32>
    %261 = arith.divf %259, %260 : vector<2x32xf32>
    %262 = vector.extract_strided_slice %253 {offsets = [0, 32], sizes = [2, 32], strides = [1, 1]} : vector<2x96xf32> to vector<2x32xf32>
    %263 = vector.extract_strided_slice %251 {offsets = [0, 32], sizes = [2, 32], strides = [1, 1]} : vector<2x96xf32> to vector<2x32xf32>
    %264 = arith.addf %262, %263 : vector<2x32xf32>
    %265 = arith.negf %264 : vector<2x32xf32>
    %266 = math.exp %265 : vector<2x32xf32>
    %cst_63 = arith.constant 1.000000e+00 : f32
    %267 = vector.broadcast %cst_63 : f32 to vector<2x32xf32>
    %268 = arith.addf %267, %266 : vector<2x32xf32>
    %269 = arith.divf %267, %268 : vector<2x32xf32>
    %270 = vector.extract_strided_slice %253 {offsets = [0, 64], sizes = [2, 32], strides = [1, 1]} : vector<2x96xf32> to vector<2x32xf32>
    %271 = vector.extract_strided_slice %251 {offsets = [0, 64], sizes = [2, 32], strides = [1, 1]} : vector<2x96xf32> to vector<2x32xf32>
    %272 = vector.broadcast %18 : vector<1x32xf32> to vector<2x32xf32>
    %273 = arith.addf %271, %272 : vector<2x32xf32>
    %274 = arith.mulf %261, %273 : vector<2x32xf32>
    %275 = arith.addf %270, %274 : vector<2x32xf32>
    %276 = math.tanh %275 : vector<2x32xf32>
    %cst_64 = arith.constant 1.000000e+00 : f32
    %277 = vector.broadcast %cst_64 : f32 to vector<2x32xf32>
    %278 = arith.subf %277, %269 : vector<2x32xf32>
    %279 = arith.mulf %278, %276 : vector<2x32xf32>
    %280 = arith.mulf %269, %248 : vector<2x32xf32>
    %281 = arith.addf %279, %280 : vector<2x32xf32>
    %282 = vector.shape_cast %281 : vector<2x32xf32> to vector<2x1x32xf32>
    %c0_65 = arith.constant 0 : index
    %c7 = arith.constant 7 : index
    %c0_66 = arith.constant 0 : index
    %283 = vector.load %arg16[%c0_65, %c7, %c0_66] : memref<2x8x32xf32, #tpu.memory_space<vmem>>, vector<2x1x32xf32>
    tpu.vector_store %arg16[%c0_65, %c7, %c0_66], %282 {strides = array<i32>} : memref<2x8x32xf32, #tpu.memory_space<vmem>>, vector<2x1x32xf32>,
    %c0_67 = arith.constant 0 : index
    %c0_68 = arith.constant 0 : index
    %284 = vector.load %arg17[%c0_67, %c0_68] : memref<2x32xf32, #tpu.memory_space<vmem>>, vector<2x32xf32>
    tpu.vector_store %arg17[%c0_67, %c0_68], %281 {strides = array<i32>} : memref<2x32xf32, #tpu.memory_space<vmem>>, vector<2x32xf32>,
    %285 = arith.truncf %281 : vector<2x32xf32> to vector<2x32xbf16>
    %c0_69 = arith.constant 0 : index
    %c0_70 = arith.constant 0 : index
    %286 = vector.load %arg8[%c0_69, %c0_70] : memref<32x32xbf16, #tpu.memory_space<vmem>>, vector<32x32xbf16>
    %cst_71 = arith.constant dense<0.000000e+00> : vector<2x32xf32>
    %287 = tpu.matmul %285, %286, %cst_71 {dimension_numbers = #tpu.dot_dimension_numbers<[1], [0], [0], [1], [0, 0, 1, 1], [], []>} : vector<2x32xbf16>, vector<32x32xbf16>, vector<2x32xf32> -> vector<2x32xf32>
    %c0_72 = arith.constant 0 : index
    %c0_73 = arith.constant 0 : index
    %288 = vector.load %arg9[%c0_72, %c0_73] : memref<1x32xf32, #tpu.memory_space<vmem>>, vector<1x32xf32>
    %289 = vector.broadcast %288 : vector<1x32xf32> to vector<2x32xf32>
    %290 = arith.addf %287, %289 : vector<2x32xf32>
    %cst_74 = arith.constant dense<0.000000e+00> : vector<32xf32>
    %291 = vector.multi_reduction <add>, %290, %cst_74 [0] : vector<2x32xf32> to vector<32xf32>
    %292 = vector.shape_cast %291 : vector<32xf32> to vector<1x32xf32>
    %cst_75 = arith.constant 2.000000e+00 : f32
    %293 = vector.broadcast %cst_75 : f32 to vector<1x32xf32>
    %294 = arith.divf %292, %293 : vector<1x32xf32>
    %295 = vector.broadcast %294 : vector<1x32xf32> to vector<2x32xf32>
    %296 = arith.subf %290, %295 : vector<2x32xf32>
    %297 = arith.mulf %296, %296 : vector<2x32xf32>
    %cst_76 = arith.constant dense<0.000000e+00> : vector<32xf32>
    %298 = vector.multi_reduction <add>, %297, %cst_76 [0] : vector<2x32xf32> to vector<32xf32>
    %299 = vector.shape_cast %298 : vector<32xf32> to vector<1x32xf32>
    %cst_77 = arith.constant 2.000000e+00 : f32
    %300 = vector.broadcast %cst_77 : f32 to vector<1x32xf32>
    %301 = arith.divf %299, %300 : vector<1x32xf32>
    %c0_78 = arith.constant 0 : index
    %c0_79 = arith.constant 0 : index
    %302 = vector.load %arg10[%c0_78, %c0_79] : memref<1x32xf32, #tpu.memory_space<vmem>>, vector<1x32xf32>
    %cst_80 = arith.constant 9.99999974E-6 : f32
    %303 = vector.broadcast %cst_80 : f32 to vector<1x32xf32>
    %304 = arith.addf %301, %303 : vector<1x32xf32>
    %305 = math.rsqrt %304 : vector<1x32xf32>
    %306 = arith.mulf %302, %305 : vector<1x32xf32>
    %307 = vector.broadcast %306 : vector<1x32xf32> to vector<2x32xf32>
    %308 = arith.mulf %296, %307 : vector<2x32xf32>
    %c0_81 = arith.constant 0 : index
    %c0_82 = arith.constant 0 : index
    %309 = vector.load %arg11[%c0_81, %c0_82] : memref<1x32xf32, #tpu.memory_space<vmem>>, vector<1x32xf32>
    %310 = vector.broadcast %309 : vector<1x32xf32> to vector<2x32xf32>
    %311 = arith.addf %308, %310 : vector<2x32xf32>
    %cst_83 = arith.constant 0.000000e+00 : f32
    %312 = vector.broadcast %cst_83 : f32 to vector<2x32xf32>
    %313 = arith.maximumf %311, %312 : vector<2x32xf32>
    %314 = arith.truncf %313 : vector<2x32xf32> to vector<2x32xbf16>
    %c0_84 = arith.constant 0 : index
    %c0_85 = arith.constant 0 : index
    %315 = vector.load %arg12[%c0_84, %c0_85] : memref<32x10xbf16, #tpu.memory_space<vmem>>, vector<32x10xbf16>
    %cst_86 = arith.constant dense<0.000000e+00> : vector<2x10xf32>
    %316 = tpu.matmul %314, %315, %cst_86 {dimension_numbers = #tpu.dot_dimension_numbers<[1], [0], [0], [1], [0, 0, 1, 1], [], []>} : vector<2x32xbf16>, vector<32x10xbf16>, vector<2x10xf32> -> vector<2x10xf32>
    %c0_87 = arith.constant 0 : index
    %c0_88 = arith.constant 0 : index
    %317 = vector.load %arg13[%c0_87, %c0_88] : memref<1x10xf32, #tpu.memory_space<vmem>>, vector<1x10xf32>
    %318 = vector.broadcast %317 : vector<1x10xf32> to vector<2x10xf32>
    %319 = arith.addf %316, %318 : vector<2x10xf32>
    %c0_89 = arith.constant 0 : index
    %c0_90 = arith.constant 0 : index
    %320 = vector.load %arg14[%c0_89, %c0_90] : memref<2x10xf32, #tpu.memory_space<vmem>>, vector<2x10xf32>
    tpu.vector_store %arg14[%c0_89, %c0_90], %319 {strides = array<i32>} : memref<2x10xf32, #tpu.memory_space<vmem>>, vector<2x10xf32>,
    return
  }
  func.func @transform_0(%arg0: i32) -> (i32, i32) {
    %c0_i32 = arith.constant 0 : i32
    %c0_i32_0 = arith.constant 0 : i32
    %c0_i32_1 = arith.constant 0 : i32
    return %c0_i32, %c0_i32_0 : i32, i32
  }
  func.func @transform_1(%arg0: i32) -> (i32, i32) {
    %c0_i32 = arith.constant 0 : i32
    %c0_i32_0 = arith.constant 0 : i32
    %c0_i32_1 = arith.constant 0 : i32
    return %c0_i32, %c0_i32_0 : i32, i32
  }
  func.func @transform_2(%arg0: i32) -> (i32, i32) {
    %c0_i32 = arith.constant 0 : i32
    %c0_i32_0 = arith.constant 0 : i32
    %c0_i32_1 = arith.constant 0 : i32
    return %c0_i32, %c0_i32_0 : i32, i32
  }
  func.func @transform_3(%arg0: i32) -> (i32, i32) {
    %c0_i32 = arith.constant 0 : i32
    %c0_i32_0 = arith.constant 0 : i32
    %c0_i32_1 = arith.constant 0 : i32
    return %c0_i32, %c0_i32_0 : i32, i32
  }
  func.func @transform_4(%arg0: i32) -> (i32, i32) {
    %c0_i32 = arith.constant 0 : i32
    %c0_i32_0 = arith.constant 0 : i32
    %c0_i32_1 = arith.constant 0 : i32
    return %c0_i32, %c0_i32_0 : i32, i32
  }
  func.func @transform_5(%arg0: i32) -> (i32, i32) {
    %c0_i32 = arith.constant 0 : i32
    %c0_i32_0 = arith.constant 0 : i32
    %c0_i32_1 = arith.constant 0 : i32
    return %c0_i32, %c0_i32_0 : i32, i32
  }
  func.func @transform_6(%arg0: i32) -> (i32, i32) {
    %c0_i32 = arith.constant 0 : i32
    %c0_i32_0 = arith.constant 0 : i32
    %c0_i32_1 = arith.constant 0 : i32
    return %c0_i32, %c0_i32_0 : i32, i32
  }
  func.func @transform_7(%arg0: i32) -> (i32, i32) {
    %c0_i32 = arith.constant 0 : i32
    %c0_i32_0 = arith.constant 0 : i32
    %c0_i32_1 = arith.constant 0 : i32
    return %c0_i32, %c0_i32_0 : i32, i32
  }
  func.func @transform_8(%arg0: i32) -> (i32, i32) {
    %c0_i32 = arith.constant 0 : i32
    %c0_i32_0 = arith.constant 0 : i32
    %c0_i32_1 = arith.constant 0 : i32
    return %c0_i32, %c0_i32_0 : i32, i32
  }
  func.func @transform_9(%arg0: i32) -> (i32, i32) {
    %c0_i32 = arith.constant 0 : i32
    %c0_i32_0 = arith.constant 0 : i32
    %c0_i32_1 = arith.constant 0 : i32
    return %c0_i32, %c0_i32_0 : i32, i32
  }
  func.func @transform_10(%arg0: i32) -> (i32, i32) {
    %c0_i32 = arith.constant 0 : i32
    %c0_i32_0 = arith.constant 0 : i32
    %c0_i32_1 = arith.constant 0 : i32
    return %c0_i32, %c0_i32_0 : i32, i32
  }
  func.func @transform_11(%arg0: i32) -> (i32, i32) {
    %c0_i32 = arith.constant 0 : i32
    %c0_i32_0 = arith.constant 0 : i32
    %c0_i32_1 = arith.constant 0 : i32
    return %c0_i32, %c0_i32_0 : i32, i32
  }
  func.func @transform_12(%arg0: i32) -> (i32, i32) {
    %c0_i32 = arith.constant 0 : i32
    %c0_i32_0 = arith.constant 0 : i32
    %c0_i32_1 = arith.constant 0 : i32
    return %c0_i32, %c0_i32_0 : i32, i32
  }
  func.func @transform_13(%arg0: i32) -> (i32, i32) {
    %c0_i32 = arith.constant 0 : i32
    %c0_i32_0 = arith.constant 0 : i32
    %c0_i32_1 = arith.constant 0 : i32
    return %c0_i32, %c0_i32_0 : i32, i32
  }
  func.func @transform_14(%arg0: i32) -> (i32, i32) {
    %c0_i32 = arith.constant 0 : i32
    %c0_i32_0 = arith.constant 0 : i32
    %c0_i32_1 = arith.constant 0 : i32
    return %c0_i32, %c0_i32_0 : i32, i32
  }
  func.func @transform_15(%arg0: i32) -> (i32, i32, i32) {
    %c0_i32 = arith.constant 0 : i32
    %c0_i32_0 = arith.constant 0 : i32
    %c0_i32_1 = arith.constant 0 : i32
    %c0_i32_2 = arith.constant 0 : i32
    return %c0_i32, %c0_i32_0, %c0_i32_1 : i32, i32, i32
  }
  func.func @transform_16(%arg0: i32) -> (i32, i32) {
    %c0_i32 = arith.constant 0 : i32
    %c0_i32_0 = arith.constant 0 : i32
    %c0_i32_1 = arith.constant 0 : i32
    return %c0_i32, %c0_i32_0 : i32, i32
  }
}

</mosaic_0001>

<llo_original>
// kernel: cpc_classifier_forward.1
$region0: #{cpc_classifier_forward.1}
  #allocation0 [shape = 'u32[]', space=smem, size = 0x4, offset = 0x4, fixed_abs, tag = 'smem constant byte address 0x4 - core index']
  #allocation1 [shape = 'u32[144,128]{1,0:T(1,128)}', space=vmem, size = 0x12000, scoped, tag = 'internal scratch']
  %s0 = inlined_call_operand.vmem [shape: f32[16,1024], index: 0, kind: input, shape index: {}]
  %s1 = inlined_call_operand.vmem [shape: bf16[1024,32], index: 1, kind: input, shape index: {}]
  %s2 = inlined_call_operand.vmem [shape: f32[1,32], index: 2, kind: input, shape index: {}]
  %s3 = inlined_call_operand.vmem [shape: bf16[32,96], index: 3, kind: input, shape index: {}]
  %s4 = inlined_call_operand.vmem [shape: f32[1,96], index: 4, kind: input, shape index: {}]
  %s5 = inlined_call_operand.vmem [shape: f32[32,96], index: 5, kind: input, shape index: {}]
  %s6 = inlined_call_operand.vmem [shape: f32[1,32], index: 6, kind: input, shape index: {}]
  %s7 = inlined_call_operand.vmem [shape: bf16[32,32], index: 7, kind: input, shape index: {}]
  %s8 = inlined_call_operand.vmem [shape: f32[1,32], index: 8, kind: input, shape index: {}]
  %s9 = inlined_call_operand.vmem [shape: f32[1,32], index: 9, kind: input, shape index: {}]
  %s10 = inlined_call_operand.vmem [shape: f32[1,32], index: 10, kind: input, shape index: {}]
  %s11 = inlined_call_operand.vmem [shape: bf16[32,10], index: 11, kind: input, shape index: {}]
  %s12 = inlined_call_operand.vmem [shape: f32[1,10], index: 12, kind: input, shape index: {}]
  %s13 = inlined_call_operand.hbm [shape: f32[2,10], index: 13, kind: output, shape index: {0}]
  %s14 = inlined_call_operand.hbm [shape: f32[16,32], index: 14, kind: output, shape index: {1}]
  %s15 = inlined_call_operand.hbm [shape: f32[2,8,32], index: 15, kind: output, shape index: {2}]
  %s16 = inlined_call_operand.vmem [shape: f32[2,32], index: 16, kind: output, shape index: {3}]
  %17 = xla_tuple %s13, %s14, %s15, %s16
  %s18 = sld [smem:[#allocation0]]
  $region86: #{cpc_classifier_forward.1} parent=0
    _
  %s20 = ssub.s32 1, %s18
  %s21 = scalar_select 0, %s20, %s18
  $region1: #{cpc_classifier_forward.1} parent=0
    #allocation2 [shape = 'u8[1024]{0}', space=vmem, size = 0x400, scoped, tag = 'output window, operand 0, single buffered']
    #allocation3 [shape = 's32[1]{0}', space=sflag, size = 0x4, scoped, tag = 'scoped memory for cpc_classifier_forward.1']
    #allocation4 [shape = 'u8[8192]{0}', space=vmem, size = 0x2000, scoped, tag = 'output window, operand 1, single buffered']
    #allocation5 [shape = 's32[1]{0}', space=sflag, size = 0x4, scoped, tag = 'scoped memory for cpc_classifier_forward.1']
    #allocation6 [shape = 'u8[8192]{0}', space=vmem, size = 0x2000, scoped, tag = 'output window, operand 2, single buffered']
    %22 = vsyncpa [#allocation3], 0
    %23 = vsyncpa [#allocation5], 0
    // Predicated region
    $region2: #{cpc_classifier_forward.1} parent=1 // pred_check
      _
    $region3: #{cpc_classifier_forward.1} parent=1 // pred_check_branch
      %25 = sbr.rel (0) target = $region5
    $region4: #{cpc_classifier_forward.1} parent=1 // pred_region
      _
    $region5: #{cpc_classifier_forward.1} parent=1 // pred_fallthru
      _
    // Predicated region
    $region6: #{cpc_classifier_forward.1} parent=1 // pred_check
      _
    $region7: #{cpc_classifier_forward.1} parent=1 // pred_check_branch
      %27 = sbr.rel (0) target = $region9
    $region8: #{cpc_classifier_forward.1} parent=1 // pred_region
      _
    $region9: #{cpc_classifier_forward.1} parent=1 // pred_fallthru
      _
    // Predicated region
    $region10: #{cpc_classifier_forward.1} parent=1 // pred_check
      _
    $region11: #{cpc_classifier_forward.1} parent=1 // pred_check_branch
      %29 = sbr.rel (0) target = $region13
    $region12: #{cpc_classifier_forward.1} parent=1 // pred_region
      _
    $region13: #{cpc_classifier_forward.1} parent=1 // pred_fallthru
      _
    // Predicated region
    $region14: #{cpc_classifier_forward.1} parent=1 // pred_check
      _
    $region15: #{cpc_classifier_forward.1} parent=1 // pred_check_branch
      %31 = sbr.rel (0) target = $region17
    $region16: #{cpc_classifier_forward.1} parent=1 // pred_region
      _
    $region17: #{cpc_classifier_forward.1} parent=1 // pred_fallthru
      _
    // Predicated region
    $region18: #{cpc_classifier_forward.1} parent=1 // pred_check
      _
    $region19: #{cpc_classifier_forward.1} parent=1 // pred_check_branch
      %33 = sbr.rel (0) target = $region21
    $region20: #{cpc_classifier_forward.1} parent=1 // pred_region
      _
    $region21: #{cpc_classifier_forward.1} parent=1 // pred_fallthru
      _
    // Predicated region
    $region22: #{cpc_classifier_forward.1} parent=1 // pred_check
      _
    $region23: #{cpc_classifier_forward.1} parent=1 // pred_check_branch
      %35 = sbr.rel (0) target = $region25
    $region24: #{cpc_classifier_forward.1} parent=1 // pred_region
      _
    $region25: #{cpc_classifier_forward.1} parent=1 // pred_fallthru
      _
    // Predicated region
    $region26: #{cpc_classifier_forward.1} parent=1 // pred_check
      _
    $region27: #{cpc_classifier_forward.1} parent=1 // pred_check_branch
      %37 = sbr.rel (0) target = $region29
    $region28: #{cpc_classifier_forward.1} parent=1 // pred_region
      _
    $region29: #{cpc_classifier_forward.1} parent=1 // pred_fallthru
      _
    // Predicated region
    $region30: #{cpc_classifier_forward.1} parent=1 // pred_check
      _
    $region31: #{cpc_classifier_forward.1} parent=1 // pred_check_branch
      %39 = sbr.rel (0) target = $region33
    $region32: #{cpc_classifier_forward.1} parent=1 // pred_region
      _
    $region33: #{cpc_classifier_forward.1} parent=1 // pred_fallthru
      _
    // Predicated region
    $region34: #{cpc_classifier_forward.1} parent=1 // pred_check
      _
    $region35: #{cpc_classifier_forward.1} parent=1 // pred_check_branch
      %41 = sbr.rel (0) target = $region37
    $region36: #{cpc_classifier_forward.1} parent=1 // pred_region
      _
    $region37: #{cpc_classifier_forward.1} parent=1 // pred_fallthru
      _
    // Predicated region
    $region38: #{cpc_classifier_forward.1} parent=1 // pred_check
      _
    $region39: #{cpc_classifier_forward.1} parent=1 // pred_check_branch
      %43 = sbr.rel (0) target = $region41
    $region40: #{cpc_classifier_forward.1} parent=1 // pred_region
      _
    $region41: #{cpc_classifier_forward.1} parent=1 // pred_fallthru
      _
    // Predicated region
    $region42: #{cpc_classifier_forward.1} parent=1 // pred_check
      _
    $region43: #{cpc_classifier_forward.1} parent=1 // pred_check_branch
      %45 = sbr.rel (0) target = $region45
    $region44: #{cpc_classifier_forward.1} parent=1 // pred_region
      _
    $region45: #{cpc_classifier_forward.1} parent=1 // pred_fallthru
      _
    // Predicated region
    $region46: #{cpc_classifier_forward.1} parent=1 // pred_check
      _
    $region47: #{cpc_classifier_forward.1} parent=1 // pred_check_branch
      %47 = sbr.rel (0) target = $region49
    $region48: #{cpc_classifier_forward.1} parent=1 // pred_region
      _
    $region49: #{cpc_classifier_forward.1} parent=1 // pred_fallthru
      _
    // Predicated region
    $region50: #{cpc_classifier_forward.1} parent=1 // pred_check
      _
    $region51: #{cpc_classifier_forward.1} parent=1 // pred_check_branch
      %49 = sbr.rel (0) target = $region53
    $region52: #{cpc_classifier_forward.1} parent=1 // pred_region
      _
    $region53: #{cpc_classifier_forward.1} parent=1 // pred_fallthru
      _
    %v51 = vld [vmem:[%s0] sm:$0xff]
    %v52 = vld [vmem:[%s0 + $0x8] sm:$0xff]
    %v53 = vld [vmem:[%s0 + $0x10] sm:$0xff]
    %v54 = vld [vmem:[%s0 + $0x18] sm:$0xff]
    %v55 = vld [vmem:[%s0 + $0x20] sm:$0xff]
    %v56 = vld [vmem:[%s0 + $0x28] sm:$0xff]
    %v57 = vld [vmem:[%s0 + $0x30] sm:$0xff]
    %v58 = vld [vmem:[%s0 + $0x38] sm:$0xff]
    %v59 = vld [vmem:[%s0 + $0x40] sm:$0xff]
    %v60 = vld [vmem:[%s0 + $0x48] sm:$0xff]
    %v61 = vld [vmem:[%s0 + $0x50] sm:$0xff]
    %v62 = vld [vmem:[%s0 + $0x58] sm:$0xff]
    %v63 = vld [vmem:[%s0 + $0x60] sm:$0xff]
    %v64 = vld [vmem:[%s0 + $0x68] sm:$0xff]
    %v65 = vld [vmem:[%s0 + $0x70] sm:$0xff]
    %v66 = vld [vmem:[%s0 + $0x78] sm:$0xff]
    %v67 = vpack.c.bf16 %v59, %v51
    %v68 = vpack.c.bf16 %v60, %v52
    %v69 = vpack.c.bf16 %v61, %v53
    %v70 = vpack.c.bf16 %v62, %v54
    %v71 = vpack.c.bf16 %v63, %v55
    %v72 = vpack.c.bf16 %v64, %v56
    %v73 = vpack.c.bf16 %v65, %v57
    %v74 = vpack.c.bf16 %v66, %v58
    %v75 = vld [vmem:[%s1] sm:$0xf]
    %v76 = vld [vmem:[%s1 + $0x4] sm:$0xf]
    %v77 = vld [vmem:[%s1 + $0x8] sm:$0xf]
    %v78 = vld [vmem:[%s1 + $0xc] sm:$0xf]
    %v79 = vld [vmem:[%s1 + $0x10] sm:$0xf]
    %v80 = vld [vmem:[%s1 + $0x14] sm:$0xf]
    %v81 = vld [vmem:[%s1 + $0x18] sm:$0xf]
    %v82 = vld [vmem:[%s1 + $0x1c] sm:$0xf]
    %v83 = vld [vmem:[%s1 + $0x20] sm:$0xf]
    %v84 = vld [vmem:[%s1 + $0x24] sm:$0xf]
    %v85 = vld [vmem:[%s1 + $0x28] sm:$0xf]
    %v86 = vld [vmem:[%s1 + $0x2c] sm:$0xf]
    %v87 = vld [vmem:[%s1 + $0x30] sm:$0xf]
    %v88 = vld [vmem:[%s1 + $0x34] sm:$0xf]
    %v89 = vld [vmem:[%s1 + $0x38] sm:$0xf]
    %v90 = vld [vmem:[%s1 + $0x3c] sm:$0xf]
    %v91 = vld [vmem:[%s1 + $0x40] sm:$0xf]
    %v92 = vld [vmem:[%s1 + $0x44] sm:$0xf]
    %v93 = vld [vmem:[%s1 + $0x48] sm:$0xf]
    %v94 = vld [vmem:[%s1 + $0x4c] sm:$0xf]
    %v95 = vld [vmem:[%s1 + $0x50] sm:$0xf]
    %v96 = vld [vmem:[%s1 + $0x54] sm:$0xf]
    %v97 = vld [vmem:[%s1 + $0x58] sm:$0xf]
    %v98 = vld [vmem:[%s1 + $0x5c] sm:$0xf]
    %v99 = vld [vmem:[%s1 + $0x60] sm:$0xf]
    %v100 = vld [vmem:[%s1 + $0x64] sm:$0xf]
    %v101 = vld [vmem:[%s1 + $0x68] sm:$0xf]
    %v102 = vld [vmem:[%s1 + $0x6c] sm:$0xf]
    %v103 = vld [vmem:[%s1 + $0x70] sm:$0xf]
    %v104 = vld [vmem:[%s1 + $0x74] sm:$0xf]
    %v105 = vld [vmem:[%s1 + $0x78] sm:$0xf]
    %v106 = vld [vmem:[%s1 + $0x7c] sm:$0xf]
    %v107 = vld [vmem:[%s1 + $0x80] sm:$0xf]
    %v108 = vld [vmem:[%s1 + $0x84] sm:$0xf]
    %v109 = vld [vmem:[%s1 + $0x88] sm:$0xf]
    %v110 = vld [vmem:[%s1 + $0x8c] sm:$0xf]
    %v111 = vld [vmem:[%s1 + $0x90] sm:$0xf]
    %v112 = vld [vmem:[%s1 + $0x94] sm:$0xf]
    %v113 = vld [vmem:[%s1 + $0x98] sm:$0xf]
    %v114 = vld [vmem:[%s1 + $0x9c] sm:$0xf]
    %v115 = vld [vmem:[%s1 + $0xa0] sm:$0xf]
    %v116 = vld [vmem:[%s1 + $0xa4] sm:$0xf]
    %v117 = vld [vmem:[%s1 + $0xa8] sm:$0xf]
    %v118 = vld [vmem:[%s1 + $0xac] sm:$0xf]
    %v119 = vld [vmem:[%s1 + $0xb0] sm:$0xf]
    %v120 = vld [vmem:[%s1 + $0xb4] sm:$0xf]
    %v121 = vld [vmem:[%s1 + $0xb8] sm:$0xf]
    %v122 = vld [vmem:[%s1 + $0xbc] sm:$0xf]
    %v123 = vld [vmem:[%s1 + $0xc0] sm:$0xf]
    %v124 = vld [vmem:[%s1 + $0xc4] sm:$0xf]
    %v125 = vld [vmem:[%s1 + $0xc8] sm:$0xf]
    %v126 = vld [vmem:[%s1 + $0xcc] sm:$0xf]
    %v127 = vld [vmem:[%s1 + $0xd0] sm:$0xf]
    %v128 = vld [vmem:[%s1 + $0xd4] sm:$0xf]
    %v129 = vld [vmem:[%s1 + $0xd8] sm:$0xf]
    %v130 = vld [vmem:[%s1 + $0xdc] sm:$0xf]
    %v131 = vld [vmem:[%s1 + $0xe0] sm:$0xf]
    %v132 = vld [vmem:[%s1 + $0xe4] sm:$0xf]
    %v133 = vld [vmem:[%s1 + $0xe8] sm:$0xf]
    %v134 = vld [vmem:[%s1 + $0xec] sm:$0xf]
    %v135 = vld [vmem:[%s1 + $0xf0] sm:$0xf]
    %v136 = vld [vmem:[%s1 + $0xf4] sm:$0xf]
    %v137 = vld [vmem:[%s1 + $0xf8] sm:$0xf]
    %v138 = vld [vmem:[%s1 + $0xfc] sm:$0xf]
    %v139 = vld [vmem:[%s1 + $0x100] sm:$0xf]
    %v140 = vld [vmem:[%s1 + $0x104] sm:$0xf]
    %v141 = vld [vmem:[%s1 + $0x108] sm:$0xf]
    %v142 = vld [vmem:[%s1 + $0x10c] sm:$0xf]
    %v143 = vld [vmem:[%s1 + $0x110] sm:$0xf]
    %v144 = vld [vmem:[%s1 + $0x114] sm:$0xf]
    %v145 = vld [vmem:[%s1 + $0x118] sm:$0xf]
    %v146 = vld [vmem:[%s1 + $0x11c] sm:$0xf]
    %v147 = vld [vmem:[%s1 + $0x120] sm:$0xf]
    %v148 = vld [vmem:[%s1 + $0x124] sm:$0xf]
    %v149 = vld [vmem:[%s1 + $0x128] sm:$0xf]
    %v150 = vld [vmem:[%s1 + $0x12c] sm:$0xf]
    %v151 = vld [vmem:[%s1 + $0x130] sm:$0xf]
    %v152 = vld [vmem:[%s1 + $0x134] sm:$0xf]
    %v153 = vld [vmem:[%s1 + $0x138] sm:$0xf]
    %v154 = vld [vmem:[%s1 + $0x13c] sm:$0xf]
    %v155 = vld [vmem:[%s1 + $0x140] sm:$0xf]
    %v156 = vld [vmem:[%s1 + $0x144] sm:$0xf]
    %v157 = vld [vmem:[%s1 + $0x148] sm:$0xf]
    %v158 = vld [vmem:[%s1 + $0x14c] sm:$0xf]
    %v159 = vld [vmem:[%s1 + $0x150] sm:$0xf]
    %v160 = vld [vmem:[%s1 + $0x154] sm:$0xf]
    %v161 = vld [vmem:[%s1 + $0x158] sm:$0xf]
    %v162 = vld [vmem:[%s1 + $0x15c] sm:$0xf]
    %v163 = vld [vmem:[%s1 + $0x160] sm:$0xf]
    %v164 = vld [vmem:[%s1 + $0x164] sm:$0xf]
    %v165 = vld [vmem:[%s1 + $0x168] sm:$0xf]
    %v166 = vld [vmem:[%s1 + $0x16c] sm:$0xf]
    %v167 = vld [vmem:[%s1 + $0x170] sm:$0xf]
    %v168 = vld [vmem:[%s1 + $0x174] sm:$0xf]
    %v169 = vld [vmem:[%s1 + $0x178] sm:$0xf]
    %v170 = vld [vmem:[%s1 + $0x17c] sm:$0xf]
    %v171 = vld [vmem:[%s1 + $0x180] sm:$0xf]
    %v172 = vld [vmem:[%s1 + $0x184] sm:$0xf]
    %v173 = vld [vmem:[%s1 + $0x188] sm:$0xf]
    %v174 = vld [vmem:[%s1 + $0x18c] sm:$0xf]
    %v175 = vld [vmem:[%s1 + $0x190] sm:$0xf]
    %v176 = vld [vmem:[%s1 + $0x194] sm:$0xf]
    %v177 = vld [vmem:[%s1 + $0x198] sm:$0xf]
    %v178 = vld [vmem:[%s1 + $0x19c] sm:$0xf]
    %v179 = vld [vmem:[%s1 + $0x1a0] sm:$0xf]
    %v180 = vld [vmem:[%s1 + $0x1a4] sm:$0xf]
    %v181 = vld [vmem:[%s1 + $0x1a8] sm:$0xf]
    %v182 = vld [vmem:[%s1 + $0x1ac] sm:$0xf]
    %v183 = vld [vmem:[%s1 + $0x1b0] sm:$0xf]
    %v184 = vld [vmem:[%s1 + $0x1b4] sm:$0xf]
    %v185 = vld [vmem:[%s1 + $0x1b8] sm:$0xf]
    %v186 = vld [vmem:[%s1 + $0x1bc] sm:$0xf]
    %v187 = vld [vmem:[%s1 + $0x1c0] sm:$0xf]
    %v188 = vld [vmem:[%s1 + $0x1c4] sm:$0xf]
    %v189 = vld [vmem:[%s1 + $0x1c8] sm:$0xf]
    %v190 = vld [vmem:[%s1 + $0x1cc] sm:$0xf]
    %v191 = vld [vmem:[%s1 + $0x1d0] sm:$0xf]
    %v192 = vld [vmem:[%s1 + $0x1d4] sm:$0xf]
    %v193 = vld [vmem:[%s1 + $0x1d8] sm:$0xf]
    %v194 = vld [vmem:[%s1 + $0x1dc] sm:$0xf]
    %v195 = vld [vmem:[%s1 + $0x1e0] sm:$0xf]
    %v196 = vld [vmem:[%s1 + $0x1e4] sm:$0xf]
    %v197 = vld [vmem:[%s1 + $0x1e8] sm:$0xf]
    %v198 = vld [vmem:[%s1 + $0x1ec] sm:$0xf]
    %v199 = vld [vmem:[%s1 + $0x1f0] sm:$0xf]
    %v200 = vld [vmem:[%s1 + $0x1f4] sm:$0xf]
    %v201 = vld [vmem:[%s1 + $0x1f8] sm:$0xf]
    %v202 = vld [vmem:[%s1 + $0x1fc] sm:$0xf]
    %v203 = vld [vmem:[%s2] sm:$0x1]
    %v205 = vlaneseq
    %v206 = vshrl.u32 %v205, 7
    %v207 = vsub.s32 0, %v206
    %v208 = vrot.slane %v203, %v207
    %v338 = vunpack.c.l.b16 %v75
    %v339 = vunpack.c.l.b16 %v76
    %v340 = vunpack.c.l.b16 %v77
    %v341 = vunpack.c.l.b16 %v78
    %v342 = vunpack.c.l.b16 %v79
    %v343 = vunpack.c.l.b16 %v80
    %v344 = vunpack.c.l.b16 %v81
    %v345 = vunpack.c.l.b16 %v82
    %v346 = vunpack.c.l.b16 %v83
    %v347 = vunpack.c.l.b16 %v84
    %v348 = vunpack.c.l.b16 %v85
    %v349 = vunpack.c.l.b16 %v86
    %v350 = vunpack.c.l.b16 %v87
    %v351 = vunpack.c.l.b16 %v88
    %v352 = vunpack.c.l.b16 %v89
    %v353 = vunpack.c.l.b16 %v90
    %v354 = vunpack.c.l.b16 %v91
    %v355 = vunpack.c.l.b16 %v92
    %v356 = vunpack.c.l.b16 %v93
    %v357 = vunpack.c.l.b16 %v94
    %v358 = vunpack.c.l.b16 %v95
    %v359 = vunpack.c.l.b16 %v96
    %v360 = vunpack.c.l.b16 %v97
    %v361 = vunpack.c.l.b16 %v98
    %v362 = vunpack.c.l.b16 %v99
    %v363 = vunpack.c.l.b16 %v100
    %v364 = vunpack.c.l.b16 %v101
    %v365 = vunpack.c.l.b16 %v102
    %v366 = vunpack.c.l.b16 %v103
    %v367 = vunpack.c.l.b16 %v104
    %v368 = vunpack.c.l.b16 %v105
    %v369 = vunpack.c.l.b16 %v106
    %v370 = vunpack.c.l.b16 %v107
    %v371 = vunpack.c.l.b16 %v108
    %v372 = vunpack.c.l.b16 %v109
    %v373 = vunpack.c.l.b16 %v110
    %v374 = vunpack.c.l.b16 %v111
    %v375 = vunpack.c.l.b16 %v112
    %v376 = vunpack.c.l.b16 %v113
    %v377 = vunpack.c.l.b16 %v114
    %v378 = vunpack.c.l.b16 %v115
    %v379 = vunpack.c.l.b16 %v116
    %v380 = vunpack.c.l.b16 %v117
    %v381 = vunpack.c.l.b16 %v118
    %v382 = vunpack.c.l.b16 %v119
    %v383 = vunpack.c.l.b16 %v120
    %v384 = vunpack.c.l.b16 %v121
    %v385 = vunpack.c.l.b16 %v122
    %v386 = vunpack.c.l.b16 %v123
    %v387 = vunpack.c.l.b16 %v124
    %v388 = vunpack.c.l.b16 %v125
    %v389 = vunpack.c.l.b16 %v126
    %v390 = vunpack.c.l.b16 %v127
    %v391 = vunpack.c.l.b16 %v128
    %v392 = vunpack.c.l.b16 %v129
    %v393 = vunpack.c.l.b16 %v130
    %v394 = vunpack.c.l.b16 %v131
    %v395 = vunpack.c.l.b16 %v132
    %v396 = vunpack.c.l.b16 %v133
    %v397 = vunpack.c.l.b16 %v134
    %v398 = vunpack.c.l.b16 %v135
    %v399 = vunpack.c.l.b16 %v136
    %v400 = vunpack.c.l.b16 %v137
    %v401 = vunpack.c.l.b16 %v138
    %v402 = vunpack.c.l.b16 %v139
    %v403 = vunpack.c.l.b16 %v140
    %v404 = vunpack.c.l.b16 %v141
    %v405 = vunpack.c.l.b16 %v142
    %v406 = vunpack.c.l.b16 %v143
    %v407 = vunpack.c.l.b16 %v144
    %v408 = vunpack.c.l.b16 %v145
    %v409 = vunpack.c.l.b16 %v146
    %v410 = vunpack.c.l.b16 %v147
    %v411 = vunpack.c.l.b16 %v148
    %v412 = vunpack.c.l.b16 %v149
    %v413 = vunpack.c.l.b16 %v150
    %v414 = vunpack.c.l.b16 %v151
    %v415 = vunpack.c.l.b16 %v152
    %v416 = vunpack.c.l.b16 %v153
    %v417 = vunpack.c.l.b16 %v154
    %v418 = vunpack.c.l.b16 %v155
    %v419 = vunpack.c.l.b16 %v156
    %v420 = vunpack.c.l.b16 %v157
    %v421 = vunpack.c.l.b16 %v158
    %v422 = vunpack.c.l.b16 %v159
    %v423 = vunpack.c.l.b16 %v160
    %v424 = vunpack.c.l.b16 %v161
    %v425 = vunpack.c.l.b16 %v162
    %v426 = vunpack.c.l.b16 %v163
    %v427 = vunpack.c.l.b16 %v164
    %v428 = vunpack.c.l.b16 %v165
    %v429 = vunpack.c.l.b16 %v166
    %v430 = vunpack.c.l.b16 %v167
    %v431 = vunpack.c.l.b16 %v168
    %v432 = vunpack.c.l.b16 %v169
    %v433 = vunpack.c.l.b16 %v170
    %v434 = vunpack.c.l.b16 %v171
    %v435 = vunpack.c.l.b16 %v172
    %v436 = vunpack.c.l.b16 %v173
    %v437 = vunpack.c.l.b16 %v174
    %v438 = vunpack.c.l.b16 %v175
    %v439 = vunpack.c.l.b16 %v176
    %v440 = vunpack.c.l.b16 %v177
    %v441 = vunpack.c.l.b16 %v178
    %v442 = vunpack.c.l.b16 %v179
    %v443 = vunpack.c.l.b16 %v180
    %v444 = vunpack.c.l.b16 %v181
    %v445 = vunpack.c.l.b16 %v182
    %v446 = vunpack.c.l.b16 %v183
    %v447 = vunpack.c.l.b16 %v184
    %v448 = vunpack.c.l.b16 %v185
    %v449 = vunpack.c.l.b16 %v186
    %v450 = vunpack.c.l.b16 %v187
    %v451 = vunpack.c.l.b16 %v188
    %v452 = vunpack.c.l.b16 %v189
    %v453 = vunpack.c.l.b16 %v190
    %v454 = vunpack.c.l.b16 %v191
    %v455 = vunpack.c.l.b16 %v192
    %v456 = vunpack.c.l.b16 %v193
    %v457 = vunpack.c.l.b16 %v194
    %v458 = vunpack.c.l.b16 %v195
    %v459 = vunpack.c.l.b16 %v196
    %v460 = vunpack.c.l.b16 %v197
    %v461 = vunpack.c.l.b16 %v198
    %v462 = vunpack.c.l.b16 %v199
    %v463 = vunpack.c.l.b16 %v200
    %v464 = vunpack.c.l.b16 %v201
    %v465 = vunpack.c.l.b16 %v202
    %v466 = vpack.c.b16 %v339, %v338
    %v467 = vpack.c.b16 %v341, %v340
    %v468 = vpack.c.b16 %v343, %v342
    %v469 = vpack.c.b16 %v345, %v344
    %v470 = vpack.c.b16 %v347, %v346
    %v471 = vpack.c.b16 %v349, %v348
    %v472 = vpack.c.b16 %v351, %v350
    %v473 = vpack.c.b16 %v353, %v352
    %v474 = vpack.c.b16 %v355, %v354
    %v475 = vpack.c.b16 %v357, %v356
    %v476 = vpack.c.b16 %v359, %v358
    %v477 = vpack.c.b16 %v361, %v360
    %v478 = vpack.c.b16 %v363, %v362
    %v479 = vpack.c.b16 %v365, %v364
    %v480 = vpack.c.b16 %v367, %v366
    %v481 = vpack.c.b16 %v369, %v368
    %v482 = vpack.c.b16 %v371, %v370
    %v483 = vpack.c.b16 %v373, %v372
    %v484 = vpack.c.b16 %v375, %v374
    %v485 = vpack.c.b16 %v377, %v376
    %v486 = vpack.c.b16 %v379, %v378
    %v487 = vpack.c.b16 %v381, %v380
    %v488 = vpack.c.b16 %v383, %v382
    %v489 = vpack.c.b16 %v385, %v384
    %v490 = vpack.c.b16 %v387, %v386
    %v491 = vpack.c.b16 %v389, %v388
    %v492 = vpack.c.b16 %v391, %v390
    %v493 = vpack.c.b16 %v393, %v392
    %v494 = vpack.c.b16 %v395, %v394
    %v495 = vpack.c.b16 %v397, %v396
    %v496 = vpack.c.b16 %v399, %v398
    %v497 = vpack.c.b16 %v401, %v400
    %v498 = vpack.c.b16 %v403, %v402
    %v499 = vpack.c.b16 %v405, %v404
    %v500 = vpack.c.b16 %v407, %v406
    %v501 = vpack.c.b16 %v409, %v408
    %v502 = vpack.c.b16 %v411, %v410
    %v503 = vpack.c.b16 %v413, %v412
    %v504 = vpack.c.b16 %v415, %v414
    %v505 = vpack.c.b16 %v417, %v416
    %v506 = vpack.c.b16 %v419, %v418
    %v507 = vpack.c.b16 %v421, %v420
    %v508 = vpack.c.b16 %v423, %v422
    %v509 = vpack.c.b16 %v425, %v424
    %v510 = vpack.c.b16 %v427, %v426
    %v511 = vpack.c.b16 %v429, %v428
    %v512 = vpack.c.b16 %v431, %v430
    %v513 = vpack.c.b16 %v433, %v432
    %v514 = vpack.c.b16 %v435, %v434
    %v515 = vpack.c.b16 %v437, %v436
    %v516 = vpack.c.b16 %v439, %v438
    %v517 = vpack.c.b16 %v441, %v440
    %v518 = vpack.c.b16 %v443, %v442
    %v519 = vpack.c.b16 %v445, %v444
    %v520 = vpack.c.b16 %v447, %v446
    %v521 = vpack.c.b16 %v449, %v448
    %v522 = vpack.c.b16 %v451, %v450
    %v523 = vpack.c.b16 %v453, %v452
    %v524 = vpack.c.b16 %v455, %v454
    %v525 = vpack.c.b16 %v457, %v456
    %v526 = vpack.c.b16 %v459, %v458
    %v527 = vpack.c.b16 %v461, %v460
    %v528 = vpack.c.b16 %v463, %v462
    %v529 = vpack.c.b16 %v465, %v464
    %594 = vmatprep.subr.bf16.mxu0 0
    %595 = vmatpush1.bf16.msra.mxu0 %v466
    %596 = vmatprep.subr.bf16.mxu0 0
    %597 = vmatpush1.bf16.msra.mxu0 %v467
    %598 = vmatprep.subr.bf16.mxu0 0
    %599 = vmatpush1.bf16.msra.mxu0 %v468
    %600 = vmatprep.subr.bf16.mxu0 0
    %601 = vmatpush1.bf16.msra.mxu0 %v469
    %602 = vmatprep.subr.bf16.mxu0 0
    %603 = vmatpush1.bf16.msra.mxu0 %v470
    %604 = vmatprep.subr.bf16.mxu0 0
    %605 = vmatpush1.bf16.msra.mxu0 %v471
    %606 = vmatprep.subr.bf16.mxu0 0
    %607 = vmatpush1.bf16.msra.mxu0 %v472
    %608 = vmatprep.subr.bf16.mxu0 0
    %609 = vmatpush1.bf16.msra.mxu0 %v473
    %610 = vmatprep.subr.bf16.mxu0 0
    %611 = vmatpush1.bf16.msra.mxu0 %v474
    %612 = vmatprep.subr.bf16.mxu0 0
    %613 = vmatpush1.bf16.msra.mxu0 %v475
    %614 = vmatprep.subr.bf16.mxu0 0
    %615 = vmatpush1.bf16.msra.mxu0 %v476
    %616 = vmatprep.subr.bf16.mxu0 0
    %617 = vmatpush1.bf16.msra.mxu0 %v477
    %618 = vmatprep.subr.bf16.mxu0 0
    %619 = vmatpush1.bf16.msra.mxu0 %v478
    %620 = vmatprep.subr.bf16.mxu0 0
    %621 = vmatpush1.bf16.msra.mxu0 %v479
    %622 = vmatprep.subr.bf16.mxu0 0
    %623 = vmatpush1.bf16.msra.mxu0 %v480
    %624 = vmatprep.subr.bf16.mxu0 0
    %625 = vmatpush1.bf16.msra.mxu0 %v481
    %626 = vmatprep.mubr.bf16.mxu0 %v68
    %627 = vmatmul.mubr.bf16.gmra.mrb[0].mxu0 %v67
    %v628 = vpop.f32.mrb[0].mxu0
    %v629 = vadd.f32 %v208, %v628
    %v630 = vpop.f32.mrb[0].mxu0
    %v631 = vpop.f32.mrb[0].mxu0
    %v632 = vadd.f32 %v208, %v631
    %v633 = vpop.f32.mrb[0].mxu0
    %634 = vdwg.mxu0
    %635 = vmatprep.subr.bf16.mxu0 0
    %636 = vmatpush1.bf16.msra.mxu0 %v482
    %637 = vmatprep.subr.bf16.mxu0 0
    %638 = vmatpush1.bf16.msra.mxu0 %v483
    %639 = vmatprep.subr.bf16.mxu0 0
    %640 = vmatpush1.bf16.msra.mxu0 %v484
    %641 = vmatprep.subr.bf16.mxu0 0
    %642 = vmatpush1.bf16.msra.mxu0 %v485
    %643 = vmatprep.subr.bf16.mxu0 0
    %644 = vmatpush1.bf16.msra.mxu0 %v486
    %645 = vmatprep.subr.bf16.mxu0 0
    %646 = vmatpush1.bf16.msra.mxu0 %v487
    %647 = vmatprep.subr.bf16.mxu0 0
    %648 = vmatpush1.bf16.msra.mxu0 %v488
    %649 = vmatprep.subr.bf16.mxu0 0
    %650 = vmatpush1.bf16.msra.mxu0 %v489
    %651 = vmatprep.subr.bf16.mxu0 0
    %652 = vmatpush1.bf16.msra.mxu0 %v490
    %653 = vmatprep.subr.bf16.mxu0 0
    %654 = vmatpush1.bf16.msra.mxu0 %v491
    %655 = vmatprep.subr.bf16.mxu0 0
    %656 = vmatpush1.bf16.msra.mxu0 %v492
    %657 = vmatprep.subr.bf16.mxu0 0
    %658 = vmatpush1.bf16.msra.mxu0 %v493
    %659 = vmatprep.subr.bf16.mxu0 0
    %660 = vmatpush1.bf16.msra.mxu0 %v494
    %661 = vmatprep.subr.bf16.mxu0 0
    %662 = vmatpush1.bf16.msra.mxu0 %v495
    %663 = vmatprep.subr.bf16.mxu0 0
    %664 = vmatpush1.bf16.msra.mxu0 %v496
    %665 = vmatprep.subr.bf16.mxu0 0
    %666 = vmatpush1.bf16.msra.mxu0 %v497
    %667 = vmatprep.mubr.bf16.mxu0 %v70
    %668 = vmatmul.mubr.bf16.gmra.mrb[0].mxu0 %v69
    %v669 = vpop.f32.mrb[0].mxu0
    %v670 = vadd.f32 %v629, %v669
    %v671 = vpop.f32.mrb[0].mxu0
    %v672 = vpop.f32.mrb[0].mxu0
    %v673 = vadd.f32 %v632, %v672
    %v674 = vpop.f32.mrb[0].mxu0
    %675 = vdwg.mxu0
    %676 = vmatprep.subr.bf16.mxu0 0
    %677 = vmatpush1.bf16.msra.mxu0 %v498
    %678 = vmatprep.subr.bf16.mxu0 0
    %679 = vmatpush1.bf16.msra.mxu0 %v499
    %680 = vmatprep.subr.bf16.mxu0 0
    %681 = vmatpush1.bf16.msra.mxu0 %v500
    %682 = vmatprep.subr.bf16.mxu0 0
    %683 = vmatpush1.bf16.msra.mxu0 %v501
    %684 = vmatprep.subr.bf16.mxu0 0
    %685 = vmatpush1.bf16.msra.mxu0 %v502
    %686 = vmatprep.subr.bf16.mxu0 0
    %687 = vmatpush1.bf16.msra.mxu0 %v503
    %688 = vmatprep.subr.bf16.mxu0 0
    %689 = vmatpush1.bf16.msra.mxu0 %v504
    %690 = vmatprep.subr.bf16.mxu0 0
    %691 = vmatpush1.bf16.msra.mxu0 %v505
    %692 = vmatprep.subr.bf16.mxu0 0
    %693 = vmatpush1.bf16.msra.mxu0 %v506
    %694 = vmatprep.subr.bf16.mxu0 0
    %695 = vmatpush1.bf16.msra.mxu0 %v507
    %696 = vmatprep.subr.bf16.mxu0 0
    %697 = vmatpush1.bf16.msra.mxu0 %v508
    %698 = vmatprep.subr.bf16.mxu0 0
    %699 = vmatpush1.bf16.msra.mxu0 %v509
    %700 = vmatprep.subr.bf16.mxu0 0
    %701 = vmatpush1.bf16.msra.mxu0 %v510
    %702 = vmatprep.subr.bf16.mxu0 0
    %703 = vmatpush1.bf16.msra.mxu0 %v511
    %704 = vmatprep.subr.bf16.mxu0 0
    %705 = vmatpush1.bf16.msra.mxu0 %v512
    %706 = vmatprep.subr.bf16.mxu0 0
    %707 = vmatpush1.bf16.msra.mxu0 %v513
    %708 = vmatprep.mubr.bf16.mxu0 %v72
    %709 = vmatmul.mubr.bf16.gmra.mrb[0].mxu0 %v71
    %v710 = vpop.f32.mrb[0].mxu0
    %v711 = vadd.f32 %v670, %v710
    %v712 = vpop.f32.mrb[0].mxu0
    %v713 = vpop.f32.mrb[0].mxu0
    %v714 = vadd.f32 %v673, %v713
    %v715 = vpop.f32.mrb[0].mxu0
    %716 = vdwg.mxu0
    %717 = vmatprep.subr.bf16.mxu0 0
    %718 = vmatpush1.bf16.msra.mxu0 %v514
    %719 = vmatprep.subr.bf16.mxu0 0
    %720 = vmatpush1.bf16.msra.mxu0 %v515
    %721 = vmatprep.subr.bf16.mxu0 0
    %722 = vmatpush1.bf16.msra.mxu0 %v516
    %723 = vmatprep.subr.bf16.mxu0 0
    %724 = vmatpush1.bf16.msra.mxu0 %v517
    %725 = vmatprep.subr.bf16.mxu0 0
    %726 = vmatpush1.bf16.msra.mxu0 %v518
    %727 = vmatprep.subr.bf16.mxu0 0
    %728 = vmatpush1.bf16.msra.mxu0 %v519
    %729 = vmatprep.subr.bf16.mxu0 0
    %730 = vmatpush1.bf16.msra.mxu0 %v520
    %731 = vmatprep.subr.bf16.mxu0 0
    %732 = vmatpush1.bf16.msra.mxu0 %v521
    %733 = vmatprep.subr.bf16.mxu0 0
    %734 = vmatpush1.bf16.msra.mxu0 %v522
    %735 = vmatprep.subr.bf16.mxu0 0
    %736 = vmatpush1.bf16.msra.mxu0 %v523
    %737 = vmatprep.subr.bf16.mxu0 0
    %738 = vmatpush1.bf16.msra.mxu0 %v524
    %739 = vmatprep.subr.bf16.mxu0 0
    %740 = vmatpush1.bf16.msra.mxu0 %v525
    %741 = vmatprep.subr.bf16.mxu0 0
    %742 = vmatpush1.bf16.msra.mxu0 %v526
    %743 = vmatprep.subr.bf16.mxu0 0
    %744 = vmatpush1.bf16.msra.mxu0 %v527
    %745 = vmatprep.subr.bf16.mxu0 0
    %746 = vmatpush1.bf16.msra.mxu0 %v528
    %747 = vmatprep.subr.bf16.mxu0 0
    %748 = vmatpush1.bf16.msra.mxu0 %v529
    %749 = vmatprep.mubr.bf16.mxu0 %v74
    %750 = vmatmul.mubr.bf16.gmra.mrb[0].mxu0 %v73
    %v751 = vpop.f32.mrb[0].mxu0
    %v752 = vadd.f32 %v711, %v751
    %v753 = vpop.f32.mrb[0].mxu0
    %v754 = vpop.f32.mrb[0].mxu0
    %v755 = vadd.f32 %v714, %v754
    %v756 = vpop.f32.mrb[0].mxu0
    %757 = vdwg.mxu0
    %v758 = vmax.f32 %v752, 0.0
    %v759 = vmax.f32 %v755, 0.0
    %vm760 = vcmask 261120
    %761 = vst.msk [vmem:[#allocation4] sm:$0xff] %vm760, %v758
    %762 = vst.msk [vmem:[#allocation4 + $0x8] sm:$0xff] %vm760, %v759
    %v763 = vpack.c.bf16 %v759, %v758
    %v764 = vld [vmem:[%s3] sm:$0xf]
    %v765 = vld [vmem:[%s3 + $0x4] sm:$0xf]
    %v766 = vld [vmem:[%s3 + $0x8] sm:$0xf]
    %v767 = vld [vmem:[%s3 + $0xc] sm:$0xf]
    %v768 = vld [vmem:[%s4] sm:$0x1]
    %v770 = vlaneseq
    %v771 = vshrl.u32 %v770, 7
    %v772 = vsub.s32 0, %v771
    %v773 = vrot.slane %v768, %v772
    %v779 = vunpack.c.l.b16 %v764
    %v780 = vunpack.c.l.b16 %v765
    %v781 = vunpack.c.l.b16 %v766
    %v782 = vunpack.c.l.b16 %v767
    %v783 = vpack.c.b16 %v780, %v779
    %v784 = vpack.c.b16 %v782, %v781
    %v788 = vsel %vm760, %v763, 0
    %790 = vmatprep.subr.bf16.mxu0 0
    %791 = vmatpush1.bf16.msra.mxu0 %v783
    %792 = vmatprep.subr.bf16.mxu0 0
    %793 = vmatpush1.bf16.msra.mxu0 %v784
    %794 = vmatprep.subr.bf16.mxu0 0
    %795 = vmatpush1.bf16.msra.mxu0 0
    %796 = vmatprep.subr.bf16.mxu0 0
    %797 = vmatpush1.bf16.msra.mxu0 0
    %798 = vmatprep.subr.bf16.mxu0 0
    %799 = vmatpush1.bf16.msra.mxu0 0
    %800 = vmatprep.subr.bf16.mxu0 0
    %801 = vmatpush1.bf16.msra.mxu0 0
    %802 = vmatprep.subr.bf16.mxu0 0
    %803 = vmatpush1.bf16.msra.mxu0 0
    %804 = vmatprep.subr.bf16.mxu0 0
    %805 = vmatpush1.bf16.msra.mxu0 0
    %806 = vmatprep.subr.bf16.mxu0 0
    %807 = vmatpush1.bf16.msra.mxu0 0
    %808 = vmatprep.subr.bf16.mxu0 0
    %809 = vmatpush1.bf16.msra.mxu0 0
    %810 = vmatprep.subr.bf16.mxu0 0
    %811 = vmatpush1.bf16.msra.mxu0 0
    %812 = vmatprep.subr.bf16.mxu0 0
    %813 = vmatpush1.bf16.msra.mxu0 0
    %814 = vmatprep.subr.bf16.mxu0 0
    %815 = vmatpush1.bf16.msra.mxu0 0
    %816 = vmatprep.subr.bf16.mxu0 0
    %817 = vmatpush1.bf16.msra.mxu0 0
    %818 = vmatprep.subr.bf16.mxu0 0
    %819 = vmatpush1.bf16.msra.mxu0 0
    %820 = vmatprep.subr.bf16.mxu0 0
    %821 = vmatpush1.bf16.msra.mxu0 0
    %822 = vmatprep.mubr.bf16.mxu0 0
    %823 = vmatmul.mubr.bf16.gmra.mrb[0].mxu0 %v788
    %v824 = vpop.f32.mrb[0].mxu0
    %v825 = vadd.f32 %v773, %v824
    %v826 = vpop.f32.mrb[0].mxu0
    %v827 = vpop.f32.mrb[0].mxu0
    %v828 = vadd.f32 %v773, %v827
    %v829 = vpop.f32.mrb[0].mxu0
    %830 = vdwg.mxu0
    %v831 = vld [vmem:[%s5] sm:$0xff]
    %v832 = vld [vmem:[%s5 + $0x8] sm:$0xff]
    %v833 = vld [vmem:[%s5 + $0x10] sm:$0xff]
    %v834 = vld [vmem:[%s5 + $0x18] sm:$0xff]
    %v835 = vld [vmem:[%s6] sm:$0x1]
    %v837 = vsel %vm760, 0.0, 0
    %839 = vmatprep.subr.mxu0 0.0
    %840 = vmatpush1.msra.mxu0 %v831
    %841 = vmatprep.subr.mxu0 0.0
    %842 = vmatpush1.msra.mxu0 %v832
    %843 = vmatprep.subr.mxu0 0.0
    %844 = vmatpush1.msra.mxu0 %v833
    %845 = vmatprep.subr.mxu0 0.0
    %846 = vmatpush1.msra.mxu0 %v834
    %847 = vmatprep.subr.mxu0 0.0
    %848 = vmatpush1.msra.mxu0 0.0
    %849 = vmatprep.subr.mxu0 0.0
    %850 = vmatpush1.msra.mxu0 0.0
    %851 = vmatprep.subr.mxu0 0.0
    %852 = vmatpush1.msra.mxu0 0.0
    %853 = vmatprep.subr.mxu0 0.0
    %854 = vmatpush1.msra.mxu0 0.0
    %855 = vmatprep.subr.mxu0 0.0
    %856 = vmatpush1.msra.mxu0 0.0
    %857 = vmatprep.subr.mxu0 0.0
    %858 = vmatpush1.msra.mxu0 0.0
    %859 = vmatprep.subr.mxu0 0.0
    %860 = vmatpush1.msra.mxu0 0.0
    %861 = vmatprep.subr.mxu0 0.0
    %862 = vmatpush1.msra.mxu0 0.0
    %863 = vmatprep.subr.mxu0 0.0
    %864 = vmatpush1.msra.mxu0 0.0
    %865 = vmatprep.subr.mxu0 0.0
    %866 = vmatpush1.msra.mxu0 0.0
    %867 = vmatprep.subr.mxu0 0.0
    %868 = vmatpush1.msra.mxu0 0.0
    %869 = vmatprep.subr.mxu0 0.0
    %870 = vmatpush1.msra.mxu0 0.0
    %871 = vmatprep.subr.mxu0 0.0
    %872 = vmatpush1.msra.mxu0 0.0
    %873 = vmatprep.subr.mxu0 0.0
    %874 = vmatpush1.msra.mxu0 0.0
    %875 = vmatprep.subr.mxu0 0.0
    %876 = vmatpush1.msra.mxu0 0.0
    %877 = vmatprep.subr.mxu0 0.0
    %878 = vmatpush1.msra.mxu0 0.0
    %879 = vmatprep.subr.mxu0 0.0
    %880 = vmatpush1.msra.mxu0 0.0
    %881 = vmatprep.subr.mxu0 0.0
    %882 = vmatpush1.msra.mxu0 0.0
    %883 = vmatprep.subr.mxu0 0.0
    %884 = vmatpush1.msra.mxu0 0.0
    %885 = vmatprep.subr.mxu0 0.0
    %886 = vmatpush1.msra.mxu0 0.0
    %887 = vmatprep.subr.mxu0 0.0
    %888 = vmatpush1.msra.mxu0 0.0
    %889 = vmatprep.subr.mxu0 0.0
    %890 = vmatpush1.msra.mxu0 0.0
    %891 = vmatprep.subr.mxu0 0.0
    %892 = vmatpush1.msra.mxu0 0.0
    %893 = vmatprep.subr.mxu0 0.0
    %894 = vmatpush1.msra.mxu0 0.0
    %895 = vmatprep.subr.mxu0 0.0
    %896 = vmatpush1.msra.mxu0 0.0
    %897 = vmatprep.subr.mxu0 0.0
    %898 = vmatpush1.msra.mxu0 0.0
    %899 = vmatprep.subr.mxu0 0.0
    %900 = vmatpush1.msra.mxu0 0.0
    %901 = vmatprep.subr.mxu0 0.0
    %902 = vmatpush1.msra.mxu0 0.0
    %903 = vmatprep.mubr.f32.mxu0 0.0
    %904 = vmatmul.mubr.f32.gmra.mrb[0].mxu0 %v837
    %v905 = vpop.f32.mrb[0].mxu0
    %v906 = vadd.f32 0.0, %v905
    %v907 = vpop.f32.mrb[0].mxu0
    %908 = vdwg.mxu0
    %v910 = vrot.slane %v906, 1
    %v913 = vadd.f32 %v825, %v906
    %v914 = vadd.f32 %v828, %v910
    %v915 = vxor.u32 %v913, 2147483648
    %v916 = vxor.u32 %v914, 2147483648
    %v917 = vmul.f32 %v915, 1.442695
    %v918 = vpow.pop %v917
    %v919 = vmul.f32 %v916, 1.442695
    %v920 = vpow.pop %v919
    %v921 = vadd.f32 %v918, 1.0
    %v922 = vadd.f32 %v920, 1.0
    %v923 = vrcp.pop %v921
    %v924 = vmul.f32 1.0, %v923
    %v925 = vrcp.pop %v922
    %v926 = vmul.f32 1.0, %v925
    %v928 = vlaneseq
    %v929 = vshrl.u32 %v928, 7
    %v930 = vsub.s32 0, %v929
    %v931 = vrot.slane %v835, %v930
    %932 = vrot.lane.b32.xlu0 %v931, 64
    %v933 = vpop.permute.xlu0 %932
    %v935 = vadd.f32 %v906, %v933
    %v937 = vrot.slane %v935, 1
    %938 = vrot.lane.b32.xlu0 %v935, 64
    %v939 = vpop.permute.xlu0 %938
    %940 = vrot.lane.b32.xlu0 %v937, 64
    %v941 = vpop.permute.xlu0 %940
    %v944 = vmul.f32 %v924, %v939
    %v945 = vmul.f32 %v926, %v941
    %948 = vrot.lane.b32.xlu0 %v944, 64
    %v949 = vpop.permute.xlu0 %948
    %950 = vrot.lane.b32.xlu0 %v945, 64
    %v951 = vpop.permute.xlu0 %950
    %v954 = vadd.f32 %v825, %v949
    %v955 = vadd.f32 %v828, %v951
    %v956 = vtanh.pop %v954
    %v957 = vtanh.pop %v955
    %v958 = vsub.f32 1.0, %v924
    %v959 = vsub.f32 1.0, %v926
    %962 = vrot.lane.b32.xlu0 %v956, 96
    %v963 = vpop.permute.xlu0 %962
    %964 = vrot.lane.b32.xlu0 %v957, 96
    %v965 = vpop.permute.xlu0 %964
    %v968 = vmul.f32 %v958, %v963
    %v969 = vmul.f32 %v959, %v965
    %v970 = vmul.f32 %v924, 0.0
    %v971 = vmul.f32 %v926, 0.0
    %v972 = vadd.f32 %v968, %v970
    %v973 = vadd.f32 %v969, %v971
    %976 = vrot.lane.b32.xlu0 %v972, 96
    %v977 = vpop.permute.xlu0 %976
    %978 = vrot.lane.b32.xlu0 %v973, 96
    %v979 = vpop.permute.xlu0 %978
    %vm982 = vcmask 253952
    %983 = vst.msk [vmem:[#allocation6] sm:$0x1] %vm982, %v977
    %984 = vst.msk [vmem:[#allocation6 + $0x8] sm:$0x1] %vm982, %v979
    %v985 = vrot.slane %v973, 7
    %vm986 = vcmask 1041409
    %v987 = vsel %vm986, %v985, %v972
    %988 = vrot.lane.b32.xlu0 %v987, 96
    %v989 = vpop.permute.xlu0 %988
    %v990 = vsel %vm760, %v989, 0
    %992 = vmatprep.subr.mxu0 0.0
    %993 = vmatpush1.msra.mxu0 %v831
    %994 = vmatprep.subr.mxu0 0.0
    %995 = vmatpush1.msra.mxu0 %v832
    %996 = vmatprep.subr.mxu0 0.0
    %997 = vmatpush1.msra.mxu0 %v833
    %998 = vmatprep.subr.mxu0 0.0
    %999 = vmatpush1.msra.mxu0 %v834
    %1000 = vmatprep.subr.mxu0 0.0
    %1001 = vmatpush1.msra.mxu0 0.0
    %1002 = vmatprep.subr.mxu0 0.0
    %1003 = vmatpush1.msra.mxu0 0.0
    %1004 = vmatprep.subr.mxu0 0.0
    %1005 = vmatpush1.msra.mxu0 0.0
    %1006 = vmatprep.subr.mxu0 0.0
    %1007 = vmatpush1.msra.mxu0 0.0
    %1008 = vmatprep.subr.mxu0 0.0
    %1009 = vmatpush1.msra.mxu0 0.0
    %1010 = vmatprep.subr.mxu0 0.0
    %1011 = vmatpush1.msra.mxu0 0.0
    %1012 = vmatprep.subr.mxu0 0.0
    %1013 = vmatpush1.msra.mxu0 0.0
    %1014 = vmatprep.subr.mxu0 0.0
    %1015 = vmatpush1.msra.mxu0 0.0
    %1016 = vmatprep.subr.mxu0 0.0
    %1017 = vmatpush1.msra.mxu0 0.0
    %1018 = vmatprep.subr.mxu0 0.0
    %1019 = vmatpush1.msra.mxu0 0.0
    %1020 = vmatprep.subr.mxu0 0.0
    %1021 = vmatpush1.msra.mxu0 0.0
    %1022 = vmatprep.subr.mxu0 0.0
    %1023 = vmatpush1.msra.mxu0 0.0
    %1024 = vmatprep.subr.mxu0 0.0
    %1025 = vmatpush1.msra.mxu0 0.0
    %1026 = vmatprep.subr.mxu0 0.0
    %1027 = vmatpush1.msra.mxu0 0.0
    %1028 = vmatprep.subr.mxu0 0.0
    %1029 = vmatpush1.msra.mxu0 0.0
    %1030 = vmatprep.subr.mxu0 0.0
    %1031 = vmatpush1.msra.mxu0 0.0
    %1032 = vmatprep.subr.mxu0 0.0
    %1033 = vmatpush1.msra.mxu0 0.0
    %1034 = vmatprep.subr.mxu0 0.0
    %1035 = vmatpush1.msra.mxu0 0.0
    %1036 = vmatprep.subr.mxu0 0.0
    %1037 = vmatpush1.msra.mxu0 0.0
    %1038 = vmatprep.subr.mxu0 0.0
    %1039 = vmatpush1.msra.mxu0 0.0
    %1040 = vmatprep.subr.mxu0 0.0
    %1041 = vmatpush1.msra.mxu0 0.0
    %1042 = vmatprep.subr.mxu0 0.0
    %1043 = vmatpush1.msra.mxu0 0.0
    %1044 = vmatprep.subr.mxu0 0.0
    %1045 = vmatpush1.msra.mxu0 0.0
    %1046 = vmatprep.subr.mxu0 0.0
    %1047 = vmatpush1.msra.mxu0 0.0
    %1048 = vmatprep.subr.mxu0 0.0
    %1049 = vmatpush1.msra.mxu0 0.0
    %1050 = vmatprep.subr.mxu0 0.0
    %1051 = vmatpush1.msra.mxu0 0.0
    %1052 = vmatprep.subr.mxu0 0.0
    %1053 = vmatpush1.msra.mxu0 0.0
    %1054 = vmatprep.subr.mxu0 0.0
    %1055 = vmatpush1.msra.mxu0 0.0
    %1056 = vmatprep.mubr.f32.mxu0 0.0
    %1057 = vmatmul.mubr.f32.gmra.mrb[0].mxu0 %v990
    %v1058 = vpop.f32.mrb[0].mxu0
    %v1059 = vadd.f32 0.0, %v1058
    %v1060 = vpop.f32.mrb[0].mxu0
    %1061 = vdwg.mxu0
    %v1063 = vrot.slane %v1059, 7
    %v1066 = vadd.f32 %v825, %v1063
    %v1067 = vadd.f32 %v828, %v1059
    %v1068 = vxor.u32 %v1066, 2147483648
    %v1069 = vxor.u32 %v1067, 2147483648
    %v1070 = vmul.f32 %v1068, 1.442695
    %v1071 = vpow.pop %v1070
    %v1072 = vmul.f32 %v1069, 1.442695
    %v1073 = vpow.pop %v1072
    %v1074 = vadd.f32 %v1071, 1.0
    %v1075 = vadd.f32 %v1073, 1.0
    %v1076 = vrcp.pop %v1074
    %v1077 = vmul.f32 1.0, %v1076
    %v1078 = vrcp.pop %v1075
    %v1079 = vmul.f32 1.0, %v1078
    %v1080 = vadd.f32 %v1059, %v933
    %v1082 = vrot.slane %v1080, 7
    %1083 = vrot.lane.b32.xlu0 %v1082, 64
    %v1084 = vpop.permute.xlu0 %1083
    %1085 = vrot.lane.b32.xlu0 %v1080, 64
    %v1086 = vpop.permute.xlu0 %1085
    %v1089 = vmul.f32 %v1077, %v1084
    %v1090 = vmul.f32 %v1079, %v1086
    %1093 = vrot.lane.b32.xlu0 %v1089, 64
    %v1094 = vpop.permute.xlu0 %1093
    %1095 = vrot.lane.b32.xlu0 %v1090, 64
    %v1096 = vpop.permute.xlu0 %1095
    %v1099 = vadd.f32 %v825, %v1094
    %v1100 = vadd.f32 %v828, %v1096
    %v1101 = vtanh.pop %v1099
    %v1102 = vtanh.pop %v1100
    %v1103 = vsub.f32 1.0, %v1077
    %v1104 = vsub.f32 1.0, %v1079
    %1107 = vrot.lane.b32.xlu0 %v1101, 96
    %v1108 = vpop.permute.xlu0 %1107
    %1109 = vrot.lane.b32.xlu0 %v1102, 96
    %v1110 = vpop.permute.xlu0 %1109
    %v1113 = vmul.f32 %v1103, %v1108
    %v1114 = vmul.f32 %v1104, %v1110
    %v1115 = vrot.slane %v972, 7
    %v1118 = vmul.f32 %v1077, %v1115
    %v1119 = vmul.f32 %v1079, %v985
    %v1120 = vadd.f32 %v1113, %v1118
    %v1121 = vadd.f32 %v1114, %v1119
    %1124 = vrot.lane.b32.xlu0 %v1120, 96
    %v1125 = vpop.permute.xlu0 %1124
    %1126 = vrot.lane.b32.xlu0 %v1121, 96
    %v1127 = vpop.permute.xlu0 %1126
    %vm1130 = vcmask 254977
    %1131 = vst.msk [vmem:[#allocation6] sm:$0x2] %vm1130, %v1125
    %1132 = vst.msk [vmem:[#allocation6 + $0x8] sm:$0x2] %vm1130, %v1127
    %v1133 = vrot.slane %v1120, 1
    %v1134 = vsel %vm986, %v1121, %v1133
    %1135 = vrot.lane.b32.xlu0 %v1134, 96
    %v1136 = vpop.permute.xlu0 %1135
    %v1137 = vsel %vm760, %v1136, 0
    %1139 = vmatprep.subr.mxu0 0.0
    %1140 = vmatpush1.msra.mxu0 %v831
    %1141 = vmatprep.subr.mxu0 0.0
    %1142 = vmatpush1.msra.mxu0 %v832
    %1143 = vmatprep.subr.mxu0 0.0
    %1144 = vmatpush1.msra.mxu0 %v833
    %1145 = vmatprep.subr.mxu0 0.0
    %1146 = vmatpush1.msra.mxu0 %v834
    %1147 = vmatprep.subr.mxu0 0.0
    %1148 = vmatpush1.msra.mxu0 0.0
    %1149 = vmatprep.subr.mxu0 0.0
    %1150 = vmatpush1.msra.mxu0 0.0
    %1151 = vmatprep.subr.mxu0 0.0
    %1152 = vmatpush1.msra.mxu0 0.0
    %1153 = vmatprep.subr.mxu0 0.0
    %1154 = vmatpush1.msra.mxu0 0.0
    %1155 = vmatprep.subr.mxu0 0.0
    %1156 = vmatpush1.msra.mxu0 0.0
    %1157 = vmatprep.subr.mxu0 0.0
    %1158 = vmatpush1.msra.mxu0 0.0
    %1159 = vmatprep.subr.mxu0 0.0
    %1160 = vmatpush1.msra.mxu0 0.0
    %1161 = vmatprep.subr.mxu0 0.0
    %1162 = vmatpush1.msra.mxu0 0.0
    %1163 = vmatprep.subr.mxu0 0.0
    %1164 = vmatpush1.msra.mxu0 0.0
    %1165 = vmatprep.subr.mxu0 0.0
    %1166 = vmatpush1.msra.mxu0 0.0
    %1167 = vmatprep.subr.mxu0 0.0
    %1168 = vmatpush1.msra.mxu0 0.0
    %1169 = vmatprep.subr.mxu0 0.0
    %1170 = vmatpush1.msra.mxu0 0.0
    %1171 = vmatprep.subr.mxu0 0.0
    %1172 = vmatpush1.msra.mxu0 0.0
    %1173 = vmatprep.subr.mxu0 0.0
    %1174 = vmatpush1.msra.mxu0 0.0
    %1175 = vmatprep.subr.mxu0 0.0
    %1176 = vmatpush1.msra.mxu0 0.0
    %1177 = vmatprep.subr.mxu0 0.0
    %1178 = vmatpush1.msra.mxu0 0.0
    %1179 = vmatprep.subr.mxu0 0.0
    %1180 = vmatpush1.msra.mxu0 0.0
    %1181 = vmatprep.subr.mxu0 0.0
    %1182 = vmatpush1.msra.mxu0 0.0
    %1183 = vmatprep.subr.mxu0 0.0
    %1184 = vmatpush1.msra.mxu0 0.0
    %1185 = vmatprep.subr.mxu0 0.0
    %1186 = vmatpush1.msra.mxu0 0.0
    %1187 = vmatprep.subr.mxu0 0.0
    %1188 = vmatpush1.msra.mxu0 0.0
    %1189 = vmatprep.subr.mxu0 0.0
    %1190 = vmatpush1.msra.mxu0 0.0
    %1191 = vmatprep.subr.mxu0 0.0
    %1192 = vmatpush1.msra.mxu0 0.0
    %1193 = vmatprep.subr.mxu0 0.0
    %1194 = vmatpush1.msra.mxu0 0.0
    %1195 = vmatprep.subr.mxu0 0.0
    %1196 = vmatpush1.msra.mxu0 0.0
    %1197 = vmatprep.subr.mxu0 0.0
    %1198 = vmatpush1.msra.mxu0 0.0
    %1199 = vmatprep.subr.mxu0 0.0
    %1200 = vmatpush1.msra.mxu0 0.0
    %1201 = vmatprep.subr.mxu0 0.0
    %1202 = vmatpush1.msra.mxu0 0.0
    %1203 = vmatprep.mubr.f32.mxu0 0.0
    %1204 = vmatmul.mubr.f32.gmra.mrb[0].mxu0 %v1137
    %v1205 = vpop.f32.mrb[0].mxu0
    %v1206 = vadd.f32 0.0, %v1205
    %v1207 = vpop.f32.mrb[0].mxu0
    %1208 = vdwg.mxu0
    %v1210 = vrot.slane %v1206, 6
    %v1211 = vrot.slane %v1206, 7
    %v1214 = vadd.f32 %v825, %v1210
    %v1215 = vadd.f32 %v828, %v1211
    %v1216 = vxor.u32 %v1214, 2147483648
    %v1217 = vxor.u32 %v1215, 2147483648
    %v1218 = vmul.f32 %v1216, 1.442695
    %v1219 = vpow.pop %v1218
    %v1220 = vmul.f32 %v1217, 1.442695
    %v1221 = vpow.pop %v1220
    %v1222 = vadd.f32 %v1219, 1.0
    %v1223 = vadd.f32 %v1221, 1.0
    %v1224 = vrcp.pop %v1222
    %v1225 = vmul.f32 1.0, %v1224
    %v1226 = vrcp.pop %v1223
    %v1227 = vmul.f32 1.0, %v1226
    %v1228 = vadd.f32 %v1206, %v933
    %v1230 = vrot.slane %v1228, 6
    %v1231 = vrot.slane %v1228, 7
    %1232 = vrot.lane.b32.xlu0 %v1230, 64
    %v1233 = vpop.permute.xlu0 %1232
    %1234 = vrot.lane.b32.xlu0 %v1231, 64
    %v1235 = vpop.permute.xlu0 %1234
    %v1238 = vmul.f32 %v1225, %v1233
    %v1239 = vmul.f32 %v1227, %v1235
    %1242 = vrot.lane.b32.xlu0 %v1238, 64
    %v1243 = vpop.permute.xlu0 %1242
    %1244 = vrot.lane.b32.xlu0 %v1239, 64
    %v1245 = vpop.permute.xlu0 %1244
    %v1248 = vadd.f32 %v825, %v1243
    %v1249 = vadd.f32 %v828, %v1245
    %v1250 = vtanh.pop %v1248
    %v1251 = vtanh.pop %v1249
    %v1252 = vsub.f32 1.0, %v1225
    %v1253 = vsub.f32 1.0, %v1227
    %1256 = vrot.lane.b32.xlu0 %v1250, 96
    %v1257 = vpop.permute.xlu0 %1256
    %1258 = vrot.lane.b32.xlu0 %v1251, 96
    %v1259 = vpop.permute.xlu0 %1258
    %v1262 = vmul.f32 %v1252, %v1257
    %v1263 = vmul.f32 %v1253, %v1259
    %v1264 = vrot.slane %v1120, 7
    %v1265 = vrot.slane %v1121, 7
    %v1268 = vmul.f32 %v1225, %v1264
    %v1269 = vmul.f32 %v1227, %v1265
    %v1270 = vadd.f32 %v1262, %v1268
    %v1271 = vadd.f32 %v1263, %v1269
    %1274 = vrot.lane.b32.xlu0 %v1270, 96
    %v1275 = vpop.permute.xlu0 %1274
    %1276 = vrot.lane.b32.xlu0 %v1271, 96
    %v1277 = vpop.permute.xlu0 %1276
    %vm1280 = vcmask 256002
    %1281 = vst.msk [vmem:[#allocation6] sm:$0x4] %vm1280, %v1275
    %1282 = vst.msk [vmem:[#allocation6 + $0x8] sm:$0x4] %vm1280, %v1277
    %v1283 = vrot.slane %v1270, 2
    %v1284 = vrot.slane %v1271, 1
    %v1285 = vsel %vm986, %v1284, %v1283
    %1286 = vrot.lane.b32.xlu0 %v1285, 96
    %v1287 = vpop.permute.xlu0 %1286
    %v1288 = vsel %vm760, %v1287, 0
    %1290 = vmatprep.subr.mxu0 0.0
    %1291 = vmatpush1.msra.mxu0 %v831
    %1292 = vmatprep.subr.mxu0 0.0
    %1293 = vmatpush1.msra.mxu0 %v832
    %1294 = vmatprep.subr.mxu0 0.0
    %1295 = vmatpush1.msra.mxu0 %v833
    %1296 = vmatprep.subr.mxu0 0.0
    %1297 = vmatpush1.msra.mxu0 %v834
    %1298 = vmatprep.subr.mxu0 0.0
    %1299 = vmatpush1.msra.mxu0 0.0
    %1300 = vmatprep.subr.mxu0 0.0
    %1301 = vmatpush1.msra.mxu0 0.0
    %1302 = vmatprep.subr.mxu0 0.0
    %1303 = vmatpush1.msra.mxu0 0.0
    %1304 = vmatprep.subr.mxu0 0.0
    %1305 = vmatpush1.msra.mxu0 0.0
    %1306 = vmatprep.subr.mxu0 0.0
    %1307 = vmatpush1.msra.mxu0 0.0
    %1308 = vmatprep.subr.mxu0 0.0
    %1309 = vmatpush1.msra.mxu0 0.0
    %1310 = vmatprep.subr.mxu0 0.0
    %1311 = vmatpush1.msra.mxu0 0.0
    %1312 = vmatprep.subr.mxu0 0.0
    %1313 = vmatpush1.msra.mxu0 0.0
    %1314 = vmatprep.subr.mxu0 0.0
    %1315 = vmatpush1.msra.mxu0 0.0
    %1316 = vmatprep.subr.mxu0 0.0
    %1317 = vmatpush1.msra.mxu0 0.0
    %1318 = vmatprep.subr.mxu0 0.0
    %1319 = vmatpush1.msra.mxu0 0.0
    %1320 = vmatprep.subr.mxu0 0.0
    %1321 = vmatpush1.msra.mxu0 0.0
    %1322 = vmatprep.subr.mxu0 0.0
    %1323 = vmatpush1.msra.mxu0 0.0
    %1324 = vmatprep.subr.mxu0 0.0
    %1325 = vmatpush1.msra.mxu0 0.0
    %1326 = vmatprep.subr.mxu0 0.0
    %1327 = vmatpush1.msra.mxu0 0.0
    %1328 = vmatprep.subr.mxu0 0.0
    %1329 = vmatpush1.msra.mxu0 0.0
    %1330 = vmatprep.subr.mxu0 0.0
    %1331 = vmatpush1.msra.mxu0 0.0
    %1332 = vmatprep.subr.mxu0 0.0
    %1333 = vmatpush1.msra.mxu0 0.0
    %1334 = vmatprep.subr.mxu0 0.0
    %1335 = vmatpush1.msra.mxu0 0.0
    %1336 = vmatprep.subr.mxu0 0.0
    %1337 = vmatpush1.msra.mxu0 0.0
    %1338 = vmatprep.subr.mxu0 0.0
    %1339 = vmatpush1.msra.mxu0 0.0
    %1340 = vmatprep.subr.mxu0 0.0
    %1341 = vmatpush1.msra.mxu0 0.0
    %1342 = vmatprep.subr.mxu0 0.0
    %1343 = vmatpush1.msra.mxu0 0.0
    %1344 = vmatprep.subr.mxu0 0.0
    %1345 = vmatpush1.msra.mxu0 0.0
    %1346 = vmatprep.subr.mxu0 0.0
    %1347 = vmatpush1.msra.mxu0 0.0
    %1348 = vmatprep.subr.mxu0 0.0
    %1349 = vmatpush1.msra.mxu0 0.0
    %1350 = vmatprep.subr.mxu0 0.0
    %1351 = vmatpush1.msra.mxu0 0.0
    %1352 = vmatprep.subr.mxu0 0.0
    %1353 = vmatpush1.msra.mxu0 0.0
    %1354 = vmatprep.mubr.f32.mxu0 0.0
    %1355 = vmatmul.mubr.f32.gmra.mrb[0].mxu0 %v1288
    %v1356 = vpop.f32.mrb[0].mxu0
    %v1357 = vadd.f32 0.0, %v1356
    %v1358 = vpop.f32.mrb[0].mxu0
    %1359 = vdwg.mxu0
    %v1361 = vrot.slane %v1357, 5
    %v1362 = vrot.slane %v1357, 6
    %v1365 = vadd.f32 %v825, %v1361
    %v1366 = vadd.f32 %v828, %v1362
    %v1367 = vxor.u32 %v1365, 2147483648
    %v1368 = vxor.u32 %v1366, 2147483648
    %v1369 = vmul.f32 %v1367, 1.442695
    %v1370 = vpow.pop %v1369
    %v1371 = vmul.f32 %v1368, 1.442695
    %v1372 = vpow.pop %v1371
    %v1373 = vadd.f32 %v1370, 1.0
    %v1374 = vadd.f32 %v1372, 1.0
    %v1375 = vrcp.pop %v1373
    %v1376 = vmul.f32 1.0, %v1375
    %v1377 = vrcp.pop %v1374
    %v1378 = vmul.f32 1.0, %v1377
    %v1379 = vadd.f32 %v1357, %v933
    %v1381 = vrot.slane %v1379, 5
    %v1382 = vrot.slane %v1379, 6
    %1383 = vrot.lane.b32.xlu0 %v1381, 64
    %v1384 = vpop.permute.xlu0 %1383
    %1385 = vrot.lane.b32.xlu0 %v1382, 64
    %v1386 = vpop.permute.xlu0 %1385
    %v1389 = vmul.f32 %v1376, %v1384
    %v1390 = vmul.f32 %v1378, %v1386
    %1393 = vrot.lane.b32.xlu0 %v1389, 64
    %v1394 = vpop.permute.xlu0 %1393
    %1395 = vrot.lane.b32.xlu0 %v1390, 64
    %v1396 = vpop.permute.xlu0 %1395
    %v1399 = vadd.f32 %v825, %v1394
    %v1400 = vadd.f32 %v828, %v1396
    %v1401 = vtanh.pop %v1399
    %v1402 = vtanh.pop %v1400
    %v1403 = vsub.f32 1.0, %v1376
    %v1404 = vsub.f32 1.0, %v1378
    %1407 = vrot.lane.b32.xlu0 %v1401, 96
    %v1408 = vpop.permute.xlu0 %1407
    %1409 = vrot.lane.b32.xlu0 %v1402, 96
    %v1410 = vpop.permute.xlu0 %1409
    %v1413 = vmul.f32 %v1403, %v1408
    %v1414 = vmul.f32 %v1404, %v1410
    %v1415 = vrot.slane %v1270, 7
    %v1416 = vrot.slane %v1271, 7
    %v1419 = vmul.f32 %v1376, %v1415
    %v1420 = vmul.f32 %v1378, %v1416
    %v1421 = vadd.f32 %v1413, %v1419
    %v1422 = vadd.f32 %v1414, %v1420
    %1425 = vrot.lane.b32.xlu0 %v1421, 96
    %v1426 = vpop.permute.xlu0 %1425
    %1427 = vrot.lane.b32.xlu0 %v1422, 96
    %v1428 = vpop.permute.xlu0 %1427
    %vm1431 = vcmask 257027
    %1432 = vst.msk [vmem:[#allocation6] sm:$0x8] %vm1431, %v1426
    %1433 = vst.msk [vmem:[#allocation6 + $0x8] sm:$0x8] %vm1431, %v1428
    %v1434 = vrot.slane %v1421, 3
    %v1435 = vrot.slane %v1422, 2
    %v1436 = vsel %vm986, %v1435, %v1434
    %1437 = vrot.lane.b32.xlu0 %v1436, 96
    %v1438 = vpop.permute.xlu0 %1437
    %v1439 = vsel %vm760, %v1438, 0
    %1441 = vmatprep.subr.mxu0 0.0
    %1442 = vmatpush1.msra.mxu0 %v831
    %1443 = vmatprep.subr.mxu0 0.0
    %1444 = vmatpush1.msra.mxu0 %v832
    %1445 = vmatprep.subr.mxu0 0.0
    %1446 = vmatpush1.msra.mxu0 %v833
    %1447 = vmatprep.subr.mxu0 0.0
    %1448 = vmatpush1.msra.mxu0 %v834
    %1449 = vmatprep.subr.mxu0 0.0
    %1450 = vmatpush1.msra.mxu0 0.0
    %1451 = vmatprep.subr.mxu0 0.0
    %1452 = vmatpush1.msra.mxu0 0.0
    %1453 = vmatprep.subr.mxu0 0.0
    %1454 = vmatpush1.msra.mxu0 0.0
    %1455 = vmatprep.subr.mxu0 0.0
    %1456 = vmatpush1.msra.mxu0 0.0
    %1457 = vmatprep.subr.mxu0 0.0
    %1458 = vmatpush1.msra.mxu0 0.0
    %1459 = vmatprep.subr.mxu0 0.0
    %1460 = vmatpush1.msra.mxu0 0.0
    %1461 = vmatprep.subr.mxu0 0.0
    %1462 = vmatpush1.msra.mxu0 0.0
    %1463 = vmatprep.subr.mxu0 0.0
    %1464 = vmatpush1.msra.mxu0 0.0
    %1465 = vmatprep.subr.mxu0 0.0
    %1466 = vmatpush1.msra.mxu0 0.0
    %1467 = vmatprep.subr.mxu0 0.0
    %1468 = vmatpush1.msra.mxu0 0.0
    %1469 = vmatprep.subr.mxu0 0.0
    %1470 = vmatpush1.msra.mxu0 0.0
    %1471 = vmatprep.subr.mxu0 0.0
    %1472 = vmatpush1.msra.mxu0 0.0
    %1473 = vmatprep.subr.mxu0 0.0
    %1474 = vmatpush1.msra.mxu0 0.0
    %1475 = vmatprep.subr.mxu0 0.0
    %1476 = vmatpush1.msra.mxu0 0.0
    %1477 = vmatprep.subr.mxu0 0.0
    %1478 = vmatpush1.msra.mxu0 0.0
    %1479 = vmatprep.subr.mxu0 0.0
    %1480 = vmatpush1.msra.mxu0 0.0
    %1481 = vmatprep.subr.mxu0 0.0
    %1482 = vmatpush1.msra.mxu0 0.0
    %1483 = vmatprep.subr.mxu0 0.0
    %1484 = vmatpush1.msra.mxu0 0.0
    %1485 = vmatprep.subr.mxu0 0.0
    %1486 = vmatpush1.msra.mxu0 0.0
    %1487 = vmatprep.subr.mxu0 0.0
    %1488 = vmatpush1.msra.mxu0 0.0
    %1489 = vmatprep.subr.mxu0 0.0
    %1490 = vmatpush1.msra.mxu0 0.0
    %1491 = vmatprep.subr.mxu0 0.0
    %1492 = vmatpush1.msra.mxu0 0.0
    %1493 = vmatprep.subr.mxu0 0.0
    %1494 = vmatpush1.msra.mxu0 0.0
    %1495 = vmatprep.subr.mxu0 0.0
    %1496 = vmatpush1.msra.mxu0 0.0
    %1497 = vmatprep.subr.mxu0 0.0
    %1498 = vmatpush1.msra.mxu0 0.0
    %1499 = vmatprep.subr.mxu0 0.0
    %1500 = vmatpush1.msra.mxu0 0.0
    %1501 = vmatprep.subr.mxu0 0.0
    %1502 = vmatpush1.msra.mxu0 0.0
    %1503 = vmatprep.subr.mxu0 0.0
    %1504 = vmatpush1.msra.mxu0 0.0
    %1505 = vmatprep.mubr.f32.mxu0 0.0
    %1506 = vmatmul.mubr.f32.gmra.mrb[0].mxu0 %v1439
    %v1507 = vpop.f32.mrb[0].mxu0
    %v1508 = vadd.f32 0.0, %v1507
    %v1509 = vpop.f32.mrb[0].mxu0
    %1510 = vdwg.mxu0
    %v1512 = vrot.slane %v1508, 4
    %v1513 = vrot.slane %v1508, 5
    %v1516 = vadd.f32 %v825, %v1512
    %v1517 = vadd.f32 %v828, %v1513
    %v1518 = vxor.u32 %v1516, 2147483648
    %v1519 = vxor.u32 %v1517, 2147483648
    %v1520 = vmul.f32 %v1518, 1.442695
    %v1521 = vpow.pop %v1520
    %v1522 = vmul.f32 %v1519, 1.442695
    %v1523 = vpow.pop %v1522
    %v1524 = vadd.f32 %v1521, 1.0
    %v1525 = vadd.f32 %v1523, 1.0
    %v1526 = vrcp.pop %v1524
    %v1527 = vmul.f32 1.0, %v1526
    %v1528 = vrcp.pop %v1525
    %v1529 = vmul.f32 1.0, %v1528
    %v1530 = vadd.f32 %v1508, %v933
    %v1532 = vrot.slane %v1530, 4
    %v1533 = vrot.slane %v1530, 5
    %1534 = vrot.lane.b32.xlu0 %v1532, 64
    %v1535 = vpop.permute.xlu0 %1534
    %1536 = vrot.lane.b32.xlu0 %v1533, 64
    %v1537 = vpop.permute.xlu0 %1536
    %v1540 = vmul.f32 %v1527, %v1535
    %v1541 = vmul.f32 %v1529, %v1537
    %1544 = vrot.lane.b32.xlu0 %v1540, 64
    %v1545 = vpop.permute.xlu0 %1544
    %1546 = vrot.lane.b32.xlu0 %v1541, 64
    %v1547 = vpop.permute.xlu0 %1546
    %v1550 = vadd.f32 %v825, %v1545
    %v1551 = vadd.f32 %v828, %v1547
    %v1552 = vtanh.pop %v1550
    %v1553 = vtanh.pop %v1551
    %v1554 = vsub.f32 1.0, %v1527
    %v1555 = vsub.f32 1.0, %v1529
    %1558 = vrot.lane.b32.xlu0 %v1552, 96
    %v1559 = vpop.permute.xlu0 %1558
    %1560 = vrot.lane.b32.xlu0 %v1553, 96
    %v1561 = vpop.permute.xlu0 %1560
    %v1564 = vmul.f32 %v1554, %v1559
    %v1565 = vmul.f32 %v1555, %v1561
    %v1566 = vrot.slane %v1421, 7
    %v1567 = vrot.slane %v1422, 7
    %v1570 = vmul.f32 %v1527, %v1566
    %v1571 = vmul.f32 %v1529, %v1567
    %v1572 = vadd.f32 %v1564, %v1570
    %v1573 = vadd.f32 %v1565, %v1571
    %1576 = vrot.lane.b32.xlu0 %v1572, 96
    %v1577 = vpop.permute.xlu0 %1576
    %1578 = vrot.lane.b32.xlu0 %v1573, 96
    %v1579 = vpop.permute.xlu0 %1578
    %vm1582 = vcmask 258052
    %1583 = vst.msk [vmem:[#allocation6] sm:$0x10] %vm1582, %v1577
    %1584 = vst.msk [vmem:[#allocation6 + $0x8] sm:$0x10] %vm1582, %v1579
    %v1585 = vrot.slane %v1572, 4
    %v1586 = vrot.slane %v1573, 3
    %v1587 = vsel %vm986, %v1586, %v1585
    %1588 = vrot.lane.b32.xlu0 %v1587, 96
    %v1589 = vpop.permute.xlu0 %1588
    %v1590 = vsel %vm760, %v1589, 0
    %1592 = vmatprep.subr.mxu0 0.0
    %1593 = vmatpush1.msra.mxu0 %v831
    %1594 = vmatprep.subr.mxu0 0.0
    %1595 = vmatpush1.msra.mxu0 %v832
    %1596 = vmatprep.subr.mxu0 0.0
    %1597 = vmatpush1.msra.mxu0 %v833
    %1598 = vmatprep.subr.mxu0 0.0
    %1599 = vmatpush1.msra.mxu0 %v834
    %1600 = vmatprep.subr.mxu0 0.0
    %1601 = vmatpush1.msra.mxu0 0.0
    %1602 = vmatprep.subr.mxu0 0.0
    %1603 = vmatpush1.msra.mxu0 0.0
    %1604 = vmatprep.subr.mxu0 0.0
    %1605 = vmatpush1.msra.mxu0 0.0
    %1606 = vmatprep.subr.mxu0 0.0
    %1607 = vmatpush1.msra.mxu0 0.0
    %1608 = vmatprep.subr.mxu0 0.0
    %1609 = vmatpush1.msra.mxu0 0.0
    %1610 = vmatprep.subr.mxu0 0.0
    %1611 = vmatpush1.msra.mxu0 0.0
    %1612 = vmatprep.subr.mxu0 0.0
    %1613 = vmatpush1.msra.mxu0 0.0
    %1614 = vmatprep.subr.mxu0 0.0
    %1615 = vmatpush1.msra.mxu0 0.0
    %1616 = vmatprep.subr.mxu0 0.0
    %1617 = vmatpush1.msra.mxu0 0.0
    %1618 = vmatprep.subr.mxu0 0.0
    %1619 = vmatpush1.msra.mxu0 0.0
    %1620 = vmatprep.subr.mxu0 0.0
    %1621 = vmatpush1.msra.mxu0 0.0
    %1622 = vmatprep.subr.mxu0 0.0
    %1623 = vmatpush1.msra.mxu0 0.0
    %1624 = vmatprep.subr.mxu0 0.0
    %1625 = vmatpush1.msra.mxu0 0.0
    %1626 = vmatprep.subr.mxu0 0.0
    %1627 = vmatpush1.msra.mxu0 0.0
    %1628 = vmatprep.subr.mxu0 0.0
    %1629 = vmatpush1.msra.mxu0 0.0
    %1630 = vmatprep.subr.mxu0 0.0
    %1631 = vmatpush1.msra.mxu0 0.0
    %1632 = vmatprep.subr.mxu0 0.0
    %1633 = vmatpush1.msra.mxu0 0.0
    %1634 = vmatprep.subr.mxu0 0.0
    %1635 = vmatpush1.msra.mxu0 0.0
    %1636 = vmatprep.subr.mxu0 0.0
    %1637 = vmatpush1.msra.mxu0 0.0
    %1638 = vmatprep.subr.mxu0 0.0
    %1639 = vmatpush1.msra.mxu0 0.0
    %1640 = vmatprep.subr.mxu0 0.0
    %1641 = vmatpush1.msra.mxu0 0.0
    %1642 = vmatprep.subr.mxu0 0.0
    %1643 = vmatpush1.msra.mxu0 0.0
    %1644 = vmatprep.subr.mxu0 0.0
    %1645 = vmatpush1.msra.mxu0 0.0
    %1646 = vmatprep.subr.mxu0 0.0
    %1647 = vmatpush1.msra.mxu0 0.0
    %1648 = vmatprep.subr.mxu0 0.0
    %1649 = vmatpush1.msra.mxu0 0.0
    %1650 = vmatprep.subr.mxu0 0.0
    %1651 = vmatpush1.msra.mxu0 0.0
    %1652 = vmatprep.subr.mxu0 0.0
    %1653 = vmatpush1.msra.mxu0 0.0
    %1654 = vmatprep.subr.mxu0 0.0
    %1655 = vmatpush1.msra.mxu0 0.0
    %1656 = vmatprep.mubr.f32.mxu0 0.0
    %1657 = vmatmul.mubr.f32.gmra.mrb[0].mxu0 %v1590
    %v1658 = vpop.f32.mrb[0].mxu0
    %v1659 = vadd.f32 0.0, %v1658
    %v1660 = vpop.f32.mrb[0].mxu0
    %1661 = vdwg.mxu0
    %v1663 = vrot.slane %v1659, 3
    %v1664 = vrot.slane %v1659, 4
    %v1667 = vadd.f32 %v825, %v1663
    %v1668 = vadd.f32 %v828, %v1664
    %v1669 = vxor.u32 %v1667, 2147483648
    %v1670 = vxor.u32 %v1668, 2147483648
    %v1671 = vmul.f32 %v1669, 1.442695
    %v1672 = vpow.pop %v1671
    %v1673 = vmul.f32 %v1670, 1.442695
    %v1674 = vpow.pop %v1673
    %v1675 = vadd.f32 %v1672, 1.0
    %v1676 = vadd.f32 %v1674, 1.0
    %v1677 = vrcp.pop %v1675
    %v1678 = vmul.f32 1.0, %v1677
    %v1679 = vrcp.pop %v1676
    %v1680 = vmul.f32 1.0, %v1679
    %v1681 = vadd.f32 %v1659, %v933
    %v1683 = vrot.slane %v1681, 3
    %v1684 = vrot.slane %v1681, 4
    %1685 = vrot.lane.b32.xlu0 %v1683, 64
    %v1686 = vpop.permute.xlu0 %1685
    %1687 = vrot.lane.b32.xlu0 %v1684, 64
    %v1688 = vpop.permute.xlu0 %1687
    %v1691 = vmul.f32 %v1678, %v1686
    %v1692 = vmul.f32 %v1680, %v1688
    %1695 = vrot.lane.b32.xlu0 %v1691, 64
    %v1696 = vpop.permute.xlu0 %1695
    %1697 = vrot.lane.b32.xlu0 %v1692, 64
    %v1698 = vpop.permute.xlu0 %1697
    %v1701 = vadd.f32 %v825, %v1696
    %v1702 = vadd.f32 %v828, %v1698
    %v1703 = vtanh.pop %v1701
    %v1704 = vtanh.pop %v1702
    %v1705 = vsub.f32 1.0, %v1678
    %v1706 = vsub.f32 1.0, %v1680
    %1709 = vrot.lane.b32.xlu0 %v1703, 96
    %v1710 = vpop.permute.xlu0 %1709
    %1711 = vrot.lane.b32.xlu0 %v1704, 96
    %v1712 = vpop.permute.xlu0 %1711
    %v1715 = vmul.f32 %v1705, %v1710
    %v1716 = vmul.f32 %v1706, %v1712
    %v1717 = vrot.slane %v1572, 7
    %v1718 = vrot.slane %v1573, 7
    %v1721 = vmul.f32 %v1678, %v1717
    %v1722 = vmul.f32 %v1680, %v1718
    %v1723 = vadd.f32 %v1715, %v1721
    %v1724 = vadd.f32 %v1716, %v1722
    %1727 = vrot.lane.b32.xlu0 %v1723, 96
    %v1728 = vpop.permute.xlu0 %1727
    %1729 = vrot.lane.b32.xlu0 %v1724, 96
    %v1730 = vpop.permute.xlu0 %1729
    %vm1733 = vcmask 259077
    %1734 = vst.msk [vmem:[#allocation6] sm:$0x20] %vm1733, %v1728
    %1735 = vst.msk [vmem:[#allocation6 + $0x8] sm:$0x20] %vm1733, %v1730
    %v1736 = vrot.slane %v1723, 5
    %v1737 = vrot.slane %v1724, 4
    %v1738 = vsel %vm986, %v1737, %v1736
    %1739 = vrot.lane.b32.xlu0 %v1738, 96
    %v1740 = vpop.permute.xlu0 %1739
    %v1741 = vsel %vm760, %v1740, 0
    %1743 = vmatprep.subr.mxu0 0.0
    %1744 = vmatpush1.msra.mxu0 %v831
    %1745 = vmatprep.subr.mxu0 0.0
    %1746 = vmatpush1.msra.mxu0 %v832
    %1747 = vmatprep.subr.mxu0 0.0
    %1748 = vmatpush1.msra.mxu0 %v833
    %1749 = vmatprep.subr.mxu0 0.0
    %1750 = vmatpush1.msra.mxu0 %v834
    %1751 = vmatprep.subr.mxu0 0.0
    %1752 = vmatpush1.msra.mxu0 0.0
    %1753 = vmatprep.subr.mxu0 0.0
    %1754 = vmatpush1.msra.mxu0 0.0
    %1755 = vmatprep.subr.mxu0 0.0
    %1756 = vmatpush1.msra.mxu0 0.0
    %1757 = vmatprep.subr.mxu0 0.0
    %1758 = vmatpush1.msra.mxu0 0.0
    %1759 = vmatprep.subr.mxu0 0.0
    %1760 = vmatpush1.msra.mxu0 0.0
    %1761 = vmatprep.subr.mxu0 0.0
    %1762 = vmatpush1.msra.mxu0 0.0
    %1763 = vmatprep.subr.mxu0 0.0
    %1764 = vmatpush1.msra.mxu0 0.0
    %1765 = vmatprep.subr.mxu0 0.0
    %1766 = vmatpush1.msra.mxu0 0.0
    %1767 = vmatprep.subr.mxu0 0.0
    %1768 = vmatpush1.msra.mxu0 0.0
    %1769 = vmatprep.subr.mxu0 0.0
    %1770 = vmatpush1.msra.mxu0 0.0
    %1771 = vmatprep.subr.mxu0 0.0
    %1772 = vmatpush1.msra.mxu0 0.0
    %1773 = vmatprep.subr.mxu0 0.0
    %1774 = vmatpush1.msra.mxu0 0.0
    %1775 = vmatprep.subr.mxu0 0.0
    %1776 = vmatpush1.msra.mxu0 0.0
    %1777 = vmatprep.subr.mxu0 0.0
    %1778 = vmatpush1.msra.mxu0 0.0
    %1779 = vmatprep.subr.mxu0 0.0
    %1780 = vmatpush1.msra.mxu0 0.0
    %1781 = vmatprep.subr.mxu0 0.0
    %1782 = vmatpush1.msra.mxu0 0.0
    %1783 = vmatprep.subr.mxu0 0.0
    %1784 = vmatpush1.msra.mxu0 0.0
    %1785 = vmatprep.subr.mxu0 0.0
    %1786 = vmatpush1.msra.mxu0 0.0
    %1787 = vmatprep.subr.mxu0 0.0
    %1788 = vmatpush1.msra.mxu0 0.0
    %1789 = vmatprep.subr.mxu0 0.0
    %1790 = vmatpush1.msra.mxu0 0.0
    %1791 = vmatprep.subr.mxu0 0.0
    %1792 = vmatpush1.msra.mxu0 0.0
    %1793 = vmatprep.subr.mxu0 0.0
    %1794 = vmatpush1.msra.mxu0 0.0
    %1795 = vmatprep.subr.mxu0 0.0
    %1796 = vmatpush1.msra.mxu0 0.0
    %1797 = vmatprep.subr.mxu0 0.0
    %1798 = vmatpush1.msra.mxu0 0.0
    %1799 = vmatprep.subr.mxu0 0.0
    %1800 = vmatpush1.msra.mxu0 0.0
    %1801 = vmatprep.subr.mxu0 0.0
    %1802 = vmatpush1.msra.mxu0 0.0
    %1803 = vmatprep.subr.mxu0 0.0
    %1804 = vmatpush1.msra.mxu0 0.0
    %1805 = vmatprep.subr.mxu0 0.0
    %1806 = vmatpush1.msra.mxu0 0.0
    %1807 = vmatprep.mubr.f32.mxu0 0.0
    %1808 = vmatmul.mubr.f32.gmra.mrb[0].mxu0 %v1741
    %v1809 = vpop.f32.mrb[0].mxu0
    %v1810 = vadd.f32 0.0, %v1809
    %v1811 = vpop.f32.mrb[0].mxu0
    %1812 = vdwg.mxu0
    %v1814 = vrot.slane %v1810, 2
    %v1815 = vrot.slane %v1810, 3
    %v1818 = vadd.f32 %v825, %v1814
    %v1819 = vadd.f32 %v828, %v1815
    %v1820 = vxor.u32 %v1818, 2147483648
    %v1821 = vxor.u32 %v1819, 2147483648
    %v1822 = vmul.f32 %v1820, 1.442695
    %v1823 = vpow.pop %v1822
    %v1824 = vmul.f32 %v1821, 1.442695
    %v1825 = vpow.pop %v1824
    %v1826 = vadd.f32 %v1823, 1.0
    %v1827 = vadd.f32 %v1825, 1.0
    %v1828 = vrcp.pop %v1826
    %v1829 = vmul.f32 1.0, %v1828
    %v1830 = vrcp.pop %v1827
    %v1831 = vmul.f32 1.0, %v1830
    %v1832 = vadd.f32 %v1810, %v933
    %v1834 = vrot.slane %v1832, 2
    %v1835 = vrot.slane %v1832, 3
    %1836 = vrot.lane.b32.xlu0 %v1834, 64
    %v1837 = vpop.permute.xlu0 %1836
    %1838 = vrot.lane.b32.xlu0 %v1835, 64
    %v1839 = vpop.permute.xlu0 %1838
    %v1842 = vmul.f32 %v1829, %v1837
    %v1843 = vmul.f32 %v1831, %v1839
    %1846 = vrot.lane.b32.xlu0 %v1842, 64
    %v1847 = vpop.permute.xlu0 %1846
    %1848 = vrot.lane.b32.xlu0 %v1843, 64
    %v1849 = vpop.permute.xlu0 %1848
    %v1852 = vadd.f32 %v825, %v1847
    %v1853 = vadd.f32 %v828, %v1849
    %v1854 = vtanh.pop %v1852
    %v1855 = vtanh.pop %v1853
    %v1856 = vsub.f32 1.0, %v1829
    %v1857 = vsub.f32 1.0, %v1831
    %1860 = vrot.lane.b32.xlu0 %v1854, 96
    %v1861 = vpop.permute.xlu0 %1860
    %1862 = vrot.lane.b32.xlu0 %v1855, 96
    %v1863 = vpop.permute.xlu0 %1862
    %v1866 = vmul.f32 %v1856, %v1861
    %v1867 = vmul.f32 %v1857, %v1863
    %v1868 = vrot.slane %v1723, 7
    %v1869 = vrot.slane %v1724, 7
    %v1872 = vmul.f32 %v1829, %v1868
    %v1873 = vmul.f32 %v1831, %v1869
    %v1874 = vadd.f32 %v1866, %v1872
    %v1875 = vadd.f32 %v1867, %v1873
    %1878 = vrot.lane.b32.xlu0 %v1874, 96
    %v1879 = vpop.permute.xlu0 %1878
    %1880 = vrot.lane.b32.xlu0 %v1875, 96
    %v1881 = vpop.permute.xlu0 %1880
    %vm1884 = vcmask 260102
    %1885 = vst.msk [vmem:[#allocation6] sm:$0x40] %vm1884, %v1879
    %1886 = vst.msk [vmem:[#allocation6 + $0x8] sm:$0x40] %vm1884, %v1881
    %v1887 = vrot.slane %v1874, 6
    %v1888 = vrot.slane %v1875, 5
    %v1889 = vsel %vm986, %v1888, %v1887
    %1890 = vrot.lane.b32.xlu0 %v1889, 96
    %v1891 = vpop.permute.xlu0 %1890
    %v1892 = vsel %vm760, %v1891, 0
    %1894 = vmatprep.subr.mxu0 0.0
    %1895 = vmatpush1.msra.mxu0 %v831
    %1896 = vmatprep.subr.mxu0 0.0
    %1897 = vmatpush1.msra.mxu0 %v832
    %1898 = vmatprep.subr.mxu0 0.0
    %1899 = vmatpush1.msra.mxu0 %v833
    %1900 = vmatprep.subr.mxu0 0.0
    %1901 = vmatpush1.msra.mxu0 %v834
    %1902 = vmatprep.subr.mxu0 0.0
    %1903 = vmatpush1.msra.mxu0 0.0
    %1904 = vmatprep.subr.mxu0 0.0
    %1905 = vmatpush1.msra.mxu0 0.0
    %1906 = vmatprep.subr.mxu0 0.0
    %1907 = vmatpush1.msra.mxu0 0.0
    %1908 = vmatprep.subr.mxu0 0.0
    %1909 = vmatpush1.msra.mxu0 0.0
    %1910 = vmatprep.subr.mxu0 0.0
    %1911 = vmatpush1.msra.mxu0 0.0
    %1912 = vmatprep.subr.mxu0 0.0
    %1913 = vmatpush1.msra.mxu0 0.0
    %1914 = vmatprep.subr.mxu0 0.0
    %1915 = vmatpush1.msra.mxu0 0.0
    %1916 = vmatprep.subr.mxu0 0.0
    %1917 = vmatpush1.msra.mxu0 0.0
    %1918 = vmatprep.subr.mxu0 0.0
    %1919 = vmatpush1.msra.mxu0 0.0
    %1920 = vmatprep.subr.mxu0 0.0
    %1921 = vmatpush1.msra.mxu0 0.0
    %1922 = vmatprep.subr.mxu0 0.0
    %1923 = vmatpush1.msra.mxu0 0.0
    %1924 = vmatprep.subr.mxu0 0.0
    %1925 = vmatpush1.msra.mxu0 0.0
    %1926 = vmatprep.subr.mxu0 0.0
    %1927 = vmatpush1.msra.mxu0 0.0
    %1928 = vmatprep.subr.mxu0 0.0
    %1929 = vmatpush1.msra.mxu0 0.0
    %1930 = vmatprep.subr.mxu0 0.0
    %1931 = vmatpush1.msra.mxu0 0.0
    %1932 = vmatprep.subr.mxu0 0.0
    %1933 = vmatpush1.msra.mxu0 0.0
    %1934 = vmatprep.subr.mxu0 0.0
    %1935 = vmatpush1.msra.mxu0 0.0
    %1936 = vmatprep.subr.mxu0 0.0
    %1937 = vmatpush1.msra.mxu0 0.0
    %1938 = vmatprep.subr.mxu0 0.0
    %1939 = vmatpush1.msra.mxu0 0.0
    %1940 = vmatprep.subr.mxu0 0.0
    %1941 = vmatpush1.msra.mxu0 0.0
    %1942 = vmatprep.subr.mxu0 0.0
    %1943 = vmatpush1.msra.mxu0 0.0
    %1944 = vmatprep.subr.mxu0 0.0
    %1945 = vmatpush1.msra.mxu0 0.0
    %1946 = vmatprep.subr.mxu0 0.0
    %1947 = vmatpush1.msra.mxu0 0.0
    %1948 = vmatprep.subr.mxu0 0.0
    %1949 = vmatpush1.msra.mxu0 0.0
    %1950 = vmatprep.subr.mxu0 0.0
    %1951 = vmatpush1.msra.mxu0 0.0
    %1952 = vmatprep.subr.mxu0 0.0
    %1953 = vmatpush1.msra.mxu0 0.0
    %1954 = vmatprep.subr.mxu0 0.0
    %1955 = vmatpush1.msra.mxu0 0.0
    %1956 = vmatprep.subr.mxu0 0.0
    %1957 = vmatpush1.msra.mxu0 0.0
    %1958 = vmatprep.mubr.f32.mxu0 0.0
    %1959 = vmatmul.mubr.f32.gmra.mrb[0].mxu0 %v1892
    %v1960 = vpop.f32.mrb[0].mxu0
    %v1961 = vadd.f32 0.0, %v1960
    %v1962 = vpop.f32.mrb[0].mxu0
    %1963 = vdwg.mxu0
    %v1965 = vrot.slane %v1961, 1
    %v1966 = vrot.slane %v1961, 2
    %v1969 = vadd.f32 %v825, %v1965
    %v1970 = vadd.f32 %v828, %v1966
    %v1971 = vxor.u32 %v1969, 2147483648
    %v1972 = vxor.u32 %v1970, 2147483648
    %v1973 = vmul.f32 %v1971, 1.442695
    %v1974 = vpow.pop %v1973
    %v1975 = vmul.f32 %v1972, 1.442695
    %v1976 = vpow.pop %v1975
    %v1977 = vadd.f32 %v1974, 1.0
    %v1978 = vadd.f32 %v1976, 1.0
    %v1979 = vrcp.pop %v1977
    %v1980 = vmul.f32 1.0, %v1979
    %v1981 = vrcp.pop %v1978
    %v1982 = vmul.f32 1.0, %v1981
    %v1983 = vadd.f32 %v1961, %v933
    %v1985 = vrot.slane %v1983, 1
    %v1986 = vrot.slane %v1983, 2
    %1987 = vrot.lane.b32.xlu0 %v1985, 64
    %v1988 = vpop.permute.xlu0 %1987
    %1989 = vrot.lane.b32.xlu0 %v1986, 64
    %v1990 = vpop.permute.xlu0 %1989
    %v1993 = vmul.f32 %v1980, %v1988
    %v1994 = vmul.f32 %v1982, %v1990
    %1997 = vrot.lane.b32.xlu0 %v1993, 64
    %v1998 = vpop.permute.xlu0 %1997
    %1999 = vrot.lane.b32.xlu0 %v1994, 64
    %v2000 = vpop.permute.xlu0 %1999
    %v2003 = vadd.f32 %v825, %v1998
    %v2004 = vadd.f32 %v828, %v2000
    %v2005 = vtanh.pop %v2003
    %v2006 = vtanh.pop %v2004
    %v2007 = vsub.f32 1.0, %v1980
    %v2008 = vsub.f32 1.0, %v1982
    %2011 = vrot.lane.b32.xlu0 %v2005, 96
    %v2012 = vpop.permute.xlu0 %2011
    %2013 = vrot.lane.b32.xlu0 %v2006, 96
    %v2014 = vpop.permute.xlu0 %2013
    %v2017 = vmul.f32 %v2007, %v2012
    %v2018 = vmul.f32 %v2008, %v2014
    %v2019 = vrot.slane %v1874, 7
    %v2020 = vrot.slane %v1875, 7
    %v2023 = vmul.f32 %v1980, %v2019
    %v2024 = vmul.f32 %v1982, %v2020
    %v2025 = vadd.f32 %v2017, %v2023
    %v2026 = vadd.f32 %v2018, %v2024
    %2029 = vrot.lane.b32.xlu0 %v2025, 96
    %v2030 = vpop.permute.xlu0 %2029
    %2031 = vrot.lane.b32.xlu0 %v2026, 96
    %v2032 = vpop.permute.xlu0 %2031
    %vm2035 = vcmask 261127
    %2036 = vst.msk [vmem:[#allocation6] sm:$0x80] %vm2035, %v2030
    %2037 = vst.msk [vmem:[#allocation6 + $0x8] sm:$0x80] %vm2035, %v2032
    %v2038 = vrot.slane %v2026, 7
    %2039 = vrot.lane.b32.xlu0 %v2038, 96
    %v2040 = vpop.permute.xlu0 %2039
    %2042 = vst.msk [vmem:[%s16 - $0x7] sm:$0x80] %vm2035, %v2030
    %2043 = vst.msk [vmem:[%s16 + $0x1] sm:$0x1] %vm982, %v2040
    %v2044 = vpack.c.bf16 %v2025, %v2025
    %v2045 = vpack.c.bf16 %v2026, %v2026
    %v2046 = vld [vmem:[%s7] sm:$0xf]
    %v2047 = vld [vmem:[%s7 + $0x4] sm:$0xf]
    %v2048 = vld [vmem:[%s7 + $0x8] sm:$0xf]
    %v2049 = vld [vmem:[%s7 + $0xc] sm:$0xf]
    %v2050 = vld [vmem:[%s8] sm:$0x1]
    %v2052 = vlaneseq
    %v2053 = vshrl.u32 %v2052, 7
    %v2054 = vsub.s32 0, %v2053
    %v2055 = vrot.slane %v2050, %v2054
    %v2059 = vunpack.c.l.b16 %v2044
    %v2060 = vunpack.c.l.b16 %v2045
    %v2061 = vrot.slane %v2059, 7
    %v2062 = vrot.slane %v2060, 6
    %v2063 = vsel %vm986, %v2062, %v2061
    %v2064 = vpack.c.b16 %v2063, %v2063
    %2065 = vrot.lane.b32.xlu0 %v2064, 96
    %v2066 = vpop.permute.xlu0 %2065
    %v2071 = vunpack.c.l.b16 %v2046
    %v2072 = vunpack.c.l.b16 %v2047
    %v2073 = vunpack.c.l.b16 %v2048
    %v2074 = vunpack.c.l.b16 %v2049
    %v2075 = vpack.c.b16 %v2072, %v2071
    %v2076 = vpack.c.b16 %v2074, %v2073
    %v2080 = vsel %vm760, %v2066, 0
    %2082 = vmatprep.subr.bf16.mxu0 0
    %2083 = vmatpush1.bf16.msra.mxu0 %v2075
    %2084 = vmatprep.subr.bf16.mxu0 0
    %2085 = vmatpush1.bf16.msra.mxu0 %v2076
    %2086 = vmatprep.subr.bf16.mxu0 0
    %2087 = vmatpush1.bf16.msra.mxu0 0
    %2088 = vmatprep.subr.bf16.mxu0 0
    %2089 = vmatpush1.bf16.msra.mxu0 0
    %2090 = vmatprep.subr.bf16.mxu0 0
    %2091 = vmatpush1.bf16.msra.mxu0 0
    %2092 = vmatprep.subr.bf16.mxu0 0
    %2093 = vmatpush1.bf16.msra.mxu0 0
    %2094 = vmatprep.subr.bf16.mxu0 0
    %2095 = vmatpush1.bf16.msra.mxu0 0
    %2096 = vmatprep.subr.bf16.mxu0 0
    %2097 = vmatpush1.bf16.msra.mxu0 0
    %2098 = vmatprep.subr.bf16.mxu0 0
    %2099 = vmatpush1.bf16.msra.mxu0 0
    %2100 = vmatprep.subr.bf16.mxu0 0
    %2101 = vmatpush1.bf16.msra.mxu0 0
    %2102 = vmatprep.subr.bf16.mxu0 0
    %2103 = vmatpush1.bf16.msra.mxu0 0
    %2104 = vmatprep.subr.bf16.mxu0 0
    %2105 = vmatpush1.bf16.msra.mxu0 0
    %2106 = vmatprep.subr.bf16.mxu0 0
    %2107 = vmatpush1.bf16.msra.mxu0 0
    %2108 = vmatprep.subr.bf16.mxu0 0
    %2109 = vmatpush1.bf16.msra.mxu0 0
    %2110 = vmatprep.subr.bf16.mxu0 0
    %2111 = vmatpush1.bf16.msra.mxu0 0
    %2112 = vmatprep.subr.bf16.mxu0 0
    %2113 = vmatpush1.bf16.msra.mxu0 0
    %2114 = vmatprep.mubr.bf16.mxu0 0
    %2115 = vmatmul.mubr.bf16.gmra.mrb[0].mxu0 %v2080
    %v2116 = vpop.f32.mrb[0].mxu0
    %v2117 = vadd.f32 %v2055, %v2116
    %v2118 = vpop.f32.mrb[0].mxu0
    %v2119 = vpop.f32.mrb[0].mxu0
    %v2120 = vpop.f32.mrb[0].mxu0
    %2121 = vdwg.mxu0
    %vm2122 = vcmask 254976
    %v2123 = vsel %vm2122, %v2117, 0.0
    %v2124 = vrot.slane %v2123, 4
    %v2125 = vadd.f32 %v2123, %v2124
    %v2126 = vrot.slane %v2125, 2
    %v2127 = vadd.f32 %v2125, %v2126
    %v2128 = vrot.slane %v2127, 1
    %v2129 = vadd.f32 %v2127, %v2128
    %v2130 = vrcp.pop 2.0
    %v2131 = vmul.f32 %v2129, %v2130
    %v2132 = vsub.f32 %v2117, %v2131
    %v2133 = vmul.f32 %v2132, %v2132
    %v2134 = vsel %vm2122, %v2133, 0.0
    %v2135 = vrot.slane %v2134, 4
    %v2136 = vadd.f32 %v2134, %v2135
    %v2137 = vrot.slane %v2136, 2
    %v2138 = vadd.f32 %v2136, %v2137
    %v2139 = vrot.slane %v2138, 1
    %v2140 = vadd.f32 %v2138, %v2139
    %v2141 = vmul.f32 %v2140, %v2130
    %v2142 = vld [vmem:[%s9] sm:$0x1]
    %v2143 = vadd.f32 %v2141, 1e-05
    %v2144 = vrsqrt.pop %v2143
    %v2145 = vmul.f32 %v2142, %v2144
    %v2147 = vlaneseq
    %v2148 = vshrl.u32 %v2147, 7
    %v2149 = vsub.s32 0, %v2148
    %v2150 = vrot.slane %v2145, %v2149
    %v2152 = vmul.f32 %v2132, %v2150
    %v2153 = vld [vmem:[%s10] sm:$0x1]
    %v2155 = vlaneseq
    %v2156 = vshrl.u32 %v2155, 7
    %v2157 = vsub.s32 0, %v2156
    %v2158 = vrot.slane %v2153, %v2157
    %v2160 = vadd.f32 %v2152, %v2158
    %v2161 = vmax.f32 %v2160, 0.0
    %v2162 = vpack.c.bf16 %v2161, %v2161
    %v2163 = vld [vmem:[%s11] sm:$0xf]
    %v2164 = vld [vmem:[%s11 + $0x4] sm:$0xf]
    %v2165 = vld [vmem:[%s11 + $0x8] sm:$0xf]
    %v2166 = vld [vmem:[%s11 + $0xc] sm:$0xf]
    %v2167 = vld [vmem:[%s12] sm:$0x1]
    %v2169 = vlaneseq
    %v2170 = vshrl.u32 %v2169, 7
    %v2171 = vsub.s32 0, %v2170
    %v2172 = vrot.slane %v2167, %v2171
    %v2178 = vunpack.c.l.b16 %v2163
    %v2179 = vunpack.c.l.b16 %v2164
    %v2180 = vunpack.c.l.b16 %v2165
    %v2181 = vunpack.c.l.b16 %v2166
    %v2182 = vpack.c.b16 %v2179, %v2178
    %v2183 = vpack.c.b16 %v2181, %v2180
    %v2187 = vsel %vm760, %v2162, 0
    %2189 = vmatprep.subr.bf16.mxu0 0
    %2190 = vmatpush1.bf16.msra.mxu0 %v2182
    %2191 = vmatprep.subr.bf16.mxu0 0
    %2192 = vmatpush1.bf16.msra.mxu0 %v2183
    %2193 = vmatprep.subr.bf16.mxu0 0
    %2194 = vmatpush1.bf16.msra.mxu0 0
    %2195 = vmatprep.subr.bf16.mxu0 0
    %2196 = vmatpush1.bf16.msra.mxu0 0
    %2197 = vmatprep.subr.bf16.mxu0 0
    %2198 = vmatpush1.bf16.msra.mxu0 0
    %2199 = vmatprep.subr.bf16.mxu0 0
    %2200 = vmatpush1.bf16.msra.mxu0 0
    %2201 = vmatprep.subr.bf16.mxu0 0
    %2202 = vmatpush1.bf16.msra.mxu0 0
    %2203 = vmatprep.subr.bf16.mxu0 0
    %2204 = vmatpush1.bf16.msra.mxu0 0
    %2205 = vmatprep.subr.bf16.mxu0 0
    %2206 = vmatpush1.bf16.msra.mxu0 0
    %2207 = vmatprep.subr.bf16.mxu0 0
    %2208 = vmatpush1.bf16.msra.mxu0 0
    %2209 = vmatprep.subr.bf16.mxu0 0
    %2210 = vmatpush1.bf16.msra.mxu0 0
    %2211 = vmatprep.subr.bf16.mxu0 0
    %2212 = vmatpush1.bf16.msra.mxu0 0
    %2213 = vmatprep.subr.bf16.mxu0 0
    %2214 = vmatpush1.bf16.msra.mxu0 0
    %2215 = vmatprep.subr.bf16.mxu0 0
    %2216 = vmatpush1.bf16.msra.mxu0 0
    %2217 = vmatprep.subr.bf16.mxu0 0
    %2218 = vmatpush1.bf16.msra.mxu0 0
    %2219 = vmatprep.subr.bf16.mxu0 0
    %2220 = vmatpush1.bf16.msra.mxu0 0
    %2221 = vmatprep.mubr.bf16.mxu0 0
    %2222 = vmatmul.mubr.bf16.gmra.mrb[0].mxu0 %v2187
    %v2223 = vpop.f32.mrb[0].mxu0
    %v2224 = vadd.f32 %v2172, %v2223
    %v2225 = vpop.f32.mrb[0].mxu0
    %v2226 = vpop.f32.mrb[0].mxu0
    %v2227 = vpop.f32.mrb[0].mxu0
    %2228 = vdwg.mxu0
    %vm2229 = vcmask 74752
    %2230 = vst.msk [vmem:[#allocation2] sm:$0x3] %vm2229, %v2224
    // Predicated region
    $region54: #{cpc_classifier_forward.1} parent=1 // pred_check
      _
    $region55: #{cpc_classifier_forward.1} parent=1 // pred_check_branch
      %2232 = sbr.rel (0) target = $region57
    $region56: #{cpc_classifier_forward.1} parent=1 // pred_region
      %s2234 = ssub.s32 32, 32
      %2235 = vsyncadd [#allocation3], %s2234
      %s2237 = sshll.u32 [#allocation2], 4
      %s2238 = int_to_ptr.vmem [resolvable:$true] %s2237
      %2240 = dma.vmem_to_hbm [thread:$0]  %s2238, 32, %s13, [#allocation3]
    $region57: #{cpc_classifier_forward.1} parent=1 // pred_fallthru
      _
    // Predicated region
    $region58: #{cpc_classifier_forward.1} parent=1 // pred_check
      _
    $region59: #{cpc_classifier_forward.1} parent=1 // pred_check_branch
      %2242 = sbr.rel (0) target = $region61
    $region60: #{cpc_classifier_forward.1} parent=1 // pred_region
      %s2244 = ssub.s32 256, 256
      %2245 = vsyncadd [#allocation5], %s2244
      %s2246 = sshll.u32 [#allocation4], 4
      %s2247 = int_to_ptr.vmem [resolvable:$true] %s2246
      %2252 = dma.vmem_to_hbm [thread:$0]  %s2247, 256, %s14, [#allocation5], 128, 128, 8
    $region61: #{cpc_classifier_forward.1} parent=1 // pred_fallthru
      _
    // Predicated region
    $region62: #{cpc_classifier_forward.1} parent=1 // pred_check
      _
    $region63: #{cpc_classifier_forward.1} parent=1 // pred_check_branch
      %2254 = sbr.rel (0) target = $region65
    $region64: #{cpc_classifier_forward.1} parent=1 // pred_region
      %s2256 = ssub.s32 256, 256
      %2257 = vsyncadd [#allocation5], %s2256
      %s2258 = sshll.u32 [#allocation6], 4
      %s2259 = int_to_ptr.vmem [resolvable:$true] %s2258
      %2264 = dma.vmem_to_hbm [thread:$0]  %s2259, 256, %s15, [#allocation5], 128, 128, 8
    $region65: #{cpc_classifier_forward.1} parent=1 // pred_fallthru
      _
    // Predicated region
    $region66: #{cpc_classifier_forward.1} parent=1 // pred_check
      _
    $region67: #{cpc_classifier_forward.1} parent=1 // pred_check_branch
      %2266 = sbr.rel (0) target = $region69
    $region68: #{cpc_classifier_forward.1} parent=1 // pred_region
      _
    $region69: #{cpc_classifier_forward.1} parent=1 // pred_fallthru
      _
    // Predicated region
    $region70: #{cpc_classifier_forward.1} parent=1 // pred_check
      _
    $region71: #{cpc_classifier_forward.1} parent=1 // pred_check_branch
      %2268 = sbr.rel (0) target = $region73
    $region72: #{cpc_classifier_forward.1} parent=1 // pred_region
      %2269 = dma.done [#allocation3], 32
    $region73: #{cpc_classifier_forward.1} parent=1 // pred_fallthru
      _
    // Predicated region
    $region74: #{cpc_classifier_forward.1} parent=1 // pred_check
      _
    $region75: #{cpc_classifier_forward.1} parent=1 // pred_check_branch
      %2271 = sbr.rel (0) target = $region77
    $region76: #{cpc_classifier_forward.1} parent=1 // pred_region
      %2272 = dma.done [#allocation5], 256
    $region77: #{cpc_classifier_forward.1} parent=1 // pred_fallthru
      _
    // Predicated region
    $region78: #{cpc_classifier_forward.1} parent=1 // pred_check
      _
    $region79: #{cpc_classifier_forward.1} parent=1 // pred_check_branch
      %2274 = sbr.rel (0) target = $region81
    $region80: #{cpc_classifier_forward.1} parent=1 // pred_region
      %2275 = dma.done [#allocation5], 256
    $region81: #{cpc_classifier_forward.1} parent=1 // pred_fallthru
      _
    // Predicated region
    $region82: #{cpc_classifier_forward.1} parent=1 // pred_check
      _
    $region83: #{cpc_classifier_forward.1} parent=1 // pred_check_branch
      %2277 = sbr.rel (0) target = $region85
    $region84: #{cpc_classifier_forward.1} parent=1 // pred_region
      _
    $region85: #{cpc_classifier_forward.1} parent=1 // pred_fallthru
      _
    %2278 = vsyncpa [#allocation3], 1
    %2279 = vsyncpa [#allocation5], 1

</llo_original>
